<compile_context>
chip_gen: v7x
topology: tpu7x:2x2x1
jax: 0.10.0
libtpu: 0.0.40
codegen_flags: <defaults>
</compile_context>

<pallas_src>
import functools

import jax
import jax.numpy as jnp
from jax.experimental import pallas as pl
from jax.experimental.pallas import tpu as pltpu

# ---- model hyper-parameters (args.*) ----
N = 131            # number of nodes (matches nn.Parameter(t.empty(131, latdim)))
LATDIM = 32        # args.latdim
HYPERNUM = 32      # args.hyperNum
GNN_LAYER = 2      # args.gnn_layer
KEEP_RATE = 0.2    # keepRate used in forward / predict

N_PAD = 256                          # lane-aligned node dimension (>= N, mult of 128)
H2 = 2 * HYPERNUM                    # concatenated [Hu | Hi] width
SLAB_CHUNKS = 1 + 2 * GNN_LAYER      # embeds + gcn[l]... + hyper[l]...
SLAB_W = ((SLAB_CHUNKS * LATDIM + 127) // 128) * 128   # lane-dense output width (256)

VMEM = pl.BlockSpec(memory_space=pltpu.MemorySpace.VMEM)


# -------------------- single fused forward kernel --------------------
def fused_forward_kernel(adj_ref, u_ref, i_ref, uh_ref, ih_ref, mask_ref, out_ref):
    u = u_ref[...]
    i = i_ref[...]
    adj = adj_ref[...]

    # setup: embeds0 and the (concatenated) hyper projections
    x = u + i                                                     # lats[0]
    uu = jnp.dot(u, uh_ref[...], preferred_element_type=jnp.float32)
    ii = jnp.dot(i, ih_ref[...], preferred_element_type=jnp.float32)
    hcat = jnp.concatenate([uu, ii], axis=1)                      # (N_PAD, 2*HYPERNUM)

    lat_sum = x
    gcn_outs = []
    hyper_outs = []
    for layer in range(GNN_LAYER):                                # fully unrolled
        # GCN branch: adj @ x  (MXU)
        gcn = jnp.dot(adj, x, preferred_element_type=jnp.float32)

        # HGNN branch with dropout.  mask is already {0, 1/keepRate}, fresh per
        # layer and per Hu/Hi half.  Hu@(Hu.T@x)+Hi@(Hi.T@x) == H@(H.T@x) for
        # H = [Hu | Hi], halving the MXU matmul count.
        H = hcat * mask_ref[layer]                                # (N_PAD, 64)
        lat = jax.lax.dot_general(                                # H.T @ x -> (64, 32)
            H, x, (((0,), (0,)), ((), ())),
            preferred_element_type=jnp.float32)
        hyper = jnp.dot(H, lat, preferred_element_type=jnp.float32)

        x = gcn + hyper
        lat_sum = lat_sum + x
        gcn_outs.append(gcn)
        hyper_outs.append(hyper)

    embeds = jnp.float32(0.0101) * lat_sum

    # lane-dense output: one (N_PAD, 256) slab, single unmasked store.
    pieces = [embeds] + gcn_outs + hyper_outs
    pad_cols = SLAB_W - SLAB_CHUNKS * LATDIM
    if pad_cols:
        pieces.append(jnp.zeros((N_PAD, pad_cols), jnp.float32))
    out_ref[...] = jnp.concatenate(pieces, axis=1)


# -------------------- jitted wrapper (pad, masks, one pallas_call, unpack) --------------------
@functools.partial(jax.jit, static_argnames=("keep_rate",))
def model_forward(adj, u_emb, i_emb, u_hyper, i_hyper, key, keep_rate=KEEP_RATE):
    n = adj.shape[0]
    # Zero padding of node rows/cols is exact for every linear op here; the
    # final [:n] slice removes it again.
    adj_p = jnp.pad(adj.astype(jnp.float32), ((0, N_PAD - n), (0, N_PAD - n)))
    u_p = jnp.pad(u_emb.astype(jnp.float32), ((0, N_PAD - n), (0, 0)))
    i_p = jnp.pad(i_emb.astype(jnp.float32), ((0, N_PAD - n), (0, 0)))

    # F.dropout(h, p=1-keepRate, training=True): keep w.p. keepRate, scale by 1/keepRate.
    # Independent masks per layer and per Hu/Hi half (last-dim halves).
    keep = jax.random.bernoulli(key, keep_rate, (GNN_LAYER, N_PAD, H2))
    masks = keep.astype(jnp.float32) * jnp.float32(1.0 / keep_rate)

    slab = pl.pallas_call(
        fused_forward_kernel,
        out_shape=jax.ShapeDtypeStruct((N_PAD, SLAB_W), jnp.float32),
        in_specs=[VMEM, VMEM, VMEM, VMEM, VMEM, VMEM],
        out_specs=VMEM,
    )(adj_p, u_p, i_p,
      u_hyper.astype(jnp.float32), i_hyper.astype(jnp.float32), masks)

    embeds = slab[:n, 0:LATDIM]
    gnn_lats = [slab[:n, (1 + l) * LATDIM:(2 + l) * LATDIM]
                for l in range(GNN_LAYER)]
    hyper_lats = [slab[:n, (1 + GNN_LAYER + l) * LATDIM:(2 + GNN_LAYER + l) * LATDIM]
                  for l in range(GNN_LAYER)]
    return embeds, gnn_lats, hyper_lats


# -------------------- deterministic parameter init (xavier_uniform) --------------------
def xavier_uniform(key, shape):
    fan_in, fan_out = shape[0], shape[1]
    limit = (6.0 / (fan_in + fan_out)) ** 0.5
    return jax.random.uniform(key, shape, jnp.float32, -limit, limit)


if __name__ == "__main__":
    root = jax.random.PRNGKey(0)
    k_u, k_i, k_uh, k_ih, k_adj, k_drop = jax.random.split(root, 6)

    u_emb = xavier_uniform(k_u, (N, LATDIM))
    i_emb = xavier_uniform(k_i, (N, LATDIM))
    u_hyper = xavier_uniform(k_uh, (LATDIM, HYPERNUM))
    i_hyper = xavier_uniform(k_ih, (LATDIM, HYPERNUM))

    # Dense stand-in for the sparse normalized adjacency (t.spmm -> dense matmul).
    adj = (jax.random.uniform(k_adj, (N, N), jnp.float32) < 0.05).astype(jnp.float32)
    adj = adj / jnp.maximum(adj.sum(axis=1, keepdims=True), 1.0)

    embeds, gnn_lats, hyper_lats = model_forward(
        adj, u_emb, i_emb, u_hyper, i_hyper, k_drop, keep_rate=KEEP_RATE)

    jax.block_until_ready(embeds)
    jax.block_until_ready(gnn_lats)
    jax.block_until_ready(hyper_lats)

    assert embeds.shape == (N, LATDIM)
    assert len(gnn_lats) == GNN_LAYER and gnn_lats[0].shape == (N, LATDIM)
    assert len(hyper_lats) == GNN_LAYER and hyper_lats[0].shape == (N, LATDIM)
    assert bool(jnp.all(jnp.isfinite(embeds)))
    print("KERNEL_OK")
</pallas_src>

<mosaic_0001>
module attributes {stable_mosaic.version = 11 : i64} {
  func.func @fused_forward_kernel(%arg0: memref<256x256xf32, #tpu.memory_space<vmem>>, %arg1: memref<256x32xf32, #tpu.memory_space<vmem>>, %arg2: memref<256x32xf32, #tpu.memory_space<vmem>>, %arg3: memref<32x32xf32, #tpu.memory_space<vmem>>, %arg4: memref<32x32xf32, #tpu.memory_space<vmem>>, %arg5: memref<2x256x64xf32, #tpu.memory_space<vmem>>, %arg6: memref<256x256xf32, #tpu.memory_space<vmem>>) attributes {dimension_semantics = [], scalar_prefetch = 0 : i64, scratch_operands = 0 : i64, tpu.core_type = #tpu.core_type<tc>} {
    %c0 = arith.constant 0 : index
    %c0_0 = arith.constant 0 : index
    %0 = vector.load %arg1[%c0, %c0_0] : memref<256x32xf32, #tpu.memory_space<vmem>>, vector<256x32xf32>
    %c0_1 = arith.constant 0 : index
    %c0_2 = arith.constant 0 : index
    %1 = vector.load %arg2[%c0_1, %c0_2] : memref<256x32xf32, #tpu.memory_space<vmem>>, vector<256x32xf32>
    %c0_3 = arith.constant 0 : index
    %c0_4 = arith.constant 0 : index
    %2 = vector.load %arg0[%c0_3, %c0_4] : memref<256x256xf32, #tpu.memory_space<vmem>>, vector<256x256xf32>
    %3 = arith.addf %0, %1 : vector<256x32xf32>
    %c0_5 = arith.constant 0 : index
    %c0_6 = arith.constant 0 : index
    %4 = vector.load %arg3[%c0_5, %c0_6] : memref<32x32xf32, #tpu.memory_space<vmem>>, vector<32x32xf32>
    %cst = arith.constant dense<0.000000e+00> : vector<256x32xf32>
    %5 = tpu.matmul %0, %4, %cst {dimension_numbers = #tpu.dot_dimension_numbers<[1], [0], [0], [1], [0, 0, 1, 1], [], []>} : vector<256x32xf32>, vector<32x32xf32>, vector<256x32xf32> -> vector<256x32xf32>
    %c0_7 = arith.constant 0 : index
    %c0_8 = arith.constant 0 : index
    %6 = vector.load %arg4[%c0_7, %c0_8] : memref<32x32xf32, #tpu.memory_space<vmem>>, vector<32x32xf32>
    %cst_9 = arith.constant dense<0.000000e+00> : vector<256x32xf32>
    %7 = tpu.matmul %1, %6, %cst_9 {dimension_numbers = #tpu.dot_dimension_numbers<[1], [0], [0], [1], [0, 0, 1, 1], [], []>} : vector<256x32xf32>, vector<32x32xf32>, vector<256x32xf32> -> vector<256x32xf32>
    %8 = tpu.concatenate %5, %7 in 1 : vector<256x32xf32>, vector<256x32xf32> -> vector<256x64xf32>
    %cst_10 = arith.constant dense<0.000000e+00> : vector<256x32xf32>
    %9 = tpu.matmul %2, %3, %cst_10 {dimension_numbers = #tpu.dot_dimension_numbers<[1], [0], [0], [1], [0, 0, 1, 1], [], []>} : vector<256x256xf32>, vector<256x32xf32>, vector<256x32xf32> -> vector<256x32xf32>
    %c0_11 = arith.constant 0 : index
    %c0_12 = arith.constant 0 : index
    %c0_13 = arith.constant 0 : index
    %10 = vector.load %arg5[%c0_11, %c0_12, %c0_13] : memref<2x256x64xf32, #tpu.memory_space<vmem>>, vector<1x256x64xf32>
    %11 = vector.shape_cast %10 : vector<1x256x64xf32> to vector<256x64xf32>
    %12 = arith.mulf %8, %11 : vector<256x64xf32>
    %cst_14 = arith.constant dense<0.000000e+00> : vector<64x32xf32>
    %13 = tpu.matmul %12, %3, %cst_14 {dimension_numbers = #tpu.dot_dimension_numbers<[0], [0], [1], [1], [0, 1, 1, 1], [], []>} : vector<256x64xf32>, vector<256x32xf32>, vector<64x32xf32> -> vector<64x32xf32>
    %cst_15 = arith.constant dense<0.000000e+00> : vector<256x32xf32>
    %14 = tpu.matmul %12, %13, %cst_15 {dimension_numbers = #tpu.dot_dimension_numbers<[1], [0], [0], [1], [0, 0, 1, 1], [], []>} : vector<256x64xf32>, vector<64x32xf32>, vector<256x32xf32> -> vector<256x32xf32>
    %15 = arith.addf %9, %14 : vector<256x32xf32>
    %16 = arith.addf %3, %15 : vector<256x32xf32>
    %cst_16 = arith.constant dense<0.000000e+00> : vector<256x32xf32>
    %17 = tpu.matmul %2, %15, %cst_16 {dimension_numbers = #tpu.dot_dimension_numbers<[1], [0], [0], [1], [0, 0, 1, 1], [], []>} : vector<256x256xf32>, vector<256x32xf32>, vector<256x32xf32> -> vector<256x32xf32>
    %c1 = arith.constant 1 : index
    %c0_17 = arith.constant 0 : index
    %c0_18 = arith.constant 0 : index
    %18 = vector.load %arg5[%c1, %c0_17, %c0_18] : memref<2x256x64xf32, #tpu.memory_space<vmem>>, vector<1x256x64xf32>
    %19 = vector.shape_cast %18 : vector<1x256x64xf32> to vector<256x64xf32>
    %20 = arith.mulf %8, %19 : vector<256x64xf32>
    %cst_19 = arith.constant dense<0.000000e+00> : vector<64x32xf32>
    %21 = tpu.matmul %20, %15, %cst_19 {dimension_numbers = #tpu.dot_dimension_numbers<[0], [0], [1], [1], [0, 1, 1, 1], [], []>} : vector<256x64xf32>, vector<256x32xf32>, vector<64x32xf32> -> vector<64x32xf32>
    %cst_20 = arith.constant dense<0.000000e+00> : vector<256x32xf32>
    %22 = tpu.matmul %20, %21, %cst_20 {dimension_numbers = #tpu.dot_dimension_numbers<[1], [0], [0], [1], [0, 0, 1, 1], [], []>} : vector<256x64xf32>, vector<64x32xf32>, vector<256x32xf32> -> vector<256x32xf32>
    %23 = arith.addf %17, %22 : vector<256x32xf32>
    %24 = arith.addf %16, %23 : vector<256x32xf32>
    %cst_21 = arith.constant 1.010000e-02 : f32
    %25 = vector.broadcast %cst_21 : f32 to vector<256x32xf32>
    %26 = arith.mulf %25, %24 : vector<256x32xf32>
    %cst_22 = arith.constant 0.000000e+00 : f32
    %27 = vector.broadcast %cst_22 : f32 to vector<256x96xf32>
    %28 = tpu.concatenate %26, %9, %17, %14, %22, %27 in 1 : vector<256x32xf32>, vector<256x32xf32>, vector<256x32xf32>, vector<256x32xf32>, vector<256x32xf32>, vector<256x96xf32> -> vector<256x256xf32>
    %c0_23 = arith.constant 0 : index
    %c0_24 = arith.constant 0 : index
    %29 = vector.load %arg6[%c0_23, %c0_24] : memref<256x256xf32, #tpu.memory_space<vmem>>, vector<256x256xf32>
    tpu.vector_store %arg6[%c0_23, %c0_24], %28 {strides = array<i32>} : memref<256x256xf32, #tpu.memory_space<vmem>>, vector<256x256xf32>,
    return
  }
}

</mosaic_0001>

<llo_original>
// kernel: model_forward.1
$region0: #{model_forward.1}
  #allocation0 [shape = 'u32[]', space=smem, size = 0x4, offset = 0x4, fixed_abs, tag = 'smem constant byte address 0x4 - core index']
  #allocation1 [shape = 'u32[144,128]{1,0:T(1,128)}', space=vmem, size = 0x12000, scoped, tag = 'internal scratch']
  %s0 = inlined_call_operand.vmem [shape: f32[256,256], index: 0, kind: input, shape index: {}]
  %s1 = inlined_call_operand.vmem [shape: f32[256,32], index: 1, kind: input, shape index: {}]
  %s2 = inlined_call_operand.vmem [shape: f32[256,32], index: 2, kind: input, shape index: {}]
  %s3 = inlined_call_operand.vmem [shape: f32[32,32], index: 3, kind: input, shape index: {}]
  %s4 = inlined_call_operand.vmem [shape: f32[32,32], index: 4, kind: input, shape index: {}]
  %s5 = inlined_call_operand.vmem [shape: f32[2,256,64], index: 5, kind: input, shape index: {}]
  %s6 = inlined_call_operand.vmem [shape: f32[256,256], index: 6, kind: output, shape index: {}]
  %s7 = sld [smem:[#allocation0]]
  $region34: #{model_forward.1} parent=0
    _
  %s9 = ssub.s32 1, %s7
  %s10 = scalar_select 0, %s9, %s7
  // Predicated region
  $region2: #{model_forward.1} parent=0 // pred_check
    _
  $region3: #{model_forward.1} parent=0 // pred_check_branch
    %12 = sbr.rel (0) target = $region5
  $region4: #{model_forward.1} parent=0 // pred_region
    _
  $region5: #{model_forward.1} parent=0 // pred_fallthru
    _
  // Predicated region
  $region6: #{model_forward.1} parent=0 // pred_check
    _
  $region7: #{model_forward.1} parent=0 // pred_check_branch
    %14 = sbr.rel (0) target = $region9
  $region8: #{model_forward.1} parent=0 // pred_region
    _
  $region9: #{model_forward.1} parent=0 // pred_fallthru
    _
  // Predicated region
  $region10: #{model_forward.1} parent=0 // pred_check
    _
  $region11: #{model_forward.1} parent=0 // pred_check_branch
    %16 = sbr.rel (0) target = $region13
  $region12: #{model_forward.1} parent=0 // pred_region
    _
  $region13: #{model_forward.1} parent=0 // pred_fallthru
    _
  // Predicated region
  $region14: #{model_forward.1} parent=0 // pred_check
    _
  $region15: #{model_forward.1} parent=0 // pred_check_branch
    %18 = sbr.rel (0) target = $region17
  $region16: #{model_forward.1} parent=0 // pred_region
    _
  $region17: #{model_forward.1} parent=0 // pred_fallthru
    _
  // Predicated region
  $region18: #{model_forward.1} parent=0 // pred_check
    _
  $region19: #{model_forward.1} parent=0 // pred_check_branch
    %20 = sbr.rel (0) target = $region21
  $region20: #{model_forward.1} parent=0 // pred_region
    _
  $region21: #{model_forward.1} parent=0 // pred_fallthru
    _
  // Predicated region
  $region22: #{model_forward.1} parent=0 // pred_check
    _
  $region23: #{model_forward.1} parent=0 // pred_check_branch
    %22 = sbr.rel (0) target = $region25
  $region24: #{model_forward.1} parent=0 // pred_region
    _
  $region25: #{model_forward.1} parent=0 // pred_fallthru
    _
  %v23 = vld [vmem:[%s1] sm:$0xff]
  %v24 = vld [vmem:[%s1 + $0x8] sm:$0xff]
  %v25 = vld [vmem:[%s1 + $0x10] sm:$0xff]
  %v26 = vld [vmem:[%s1 + $0x18] sm:$0xff]
  %v27 = vld [vmem:[%s1 + $0x20] sm:$0xff]
  %v28 = vld [vmem:[%s1 + $0x28] sm:$0xff]
  %v29 = vld [vmem:[%s1 + $0x30] sm:$0xff]
  %v30 = vld [vmem:[%s1 + $0x38] sm:$0xff]
  %v31 = vld [vmem:[%s1 + $0x40] sm:$0xff]
  %v32 = vld [vmem:[%s1 + $0x48] sm:$0xff]
  %v33 = vld [vmem:[%s1 + $0x50] sm:$0xff]
  %v34 = vld [vmem:[%s1 + $0x58] sm:$0xff]
  %v35 = vld [vmem:[%s1 + $0x60] sm:$0xff]
  %v36 = vld [vmem:[%s1 + $0x68] sm:$0xff]
  %v37 = vld [vmem:[%s1 + $0x70] sm:$0xff]
  %v38 = vld [vmem:[%s1 + $0x78] sm:$0xff]
  %v39 = vld [vmem:[%s1 + $0x80] sm:$0xff]
  %v40 = vld [vmem:[%s1 + $0x88] sm:$0xff]
  %v41 = vld [vmem:[%s1 + $0x90] sm:$0xff]
  %v42 = vld [vmem:[%s1 + $0x98] sm:$0xff]
  %v43 = vld [vmem:[%s1 + $0xa0] sm:$0xff]
  %v44 = vld [vmem:[%s1 + $0xa8] sm:$0xff]
  %v45 = vld [vmem:[%s1 + $0xb0] sm:$0xff]
  %v46 = vld [vmem:[%s1 + $0xb8] sm:$0xff]
  %v47 = vld [vmem:[%s1 + $0xc0] sm:$0xff]
  %v48 = vld [vmem:[%s1 + $0xc8] sm:$0xff]
  %v49 = vld [vmem:[%s1 + $0xd0] sm:$0xff]
  %v50 = vld [vmem:[%s1 + $0xd8] sm:$0xff]
  %v51 = vld [vmem:[%s1 + $0xe0] sm:$0xff]
  %v52 = vld [vmem:[%s1 + $0xe8] sm:$0xff]
  %v53 = vld [vmem:[%s1 + $0xf0] sm:$0xff]
  %v54 = vld [vmem:[%s1 + $0xf8] sm:$0xff]
  %v55 = vld [vmem:[%s2] sm:$0xff]
  %v56 = vld [vmem:[%s2 + $0x8] sm:$0xff]
  %v57 = vld [vmem:[%s2 + $0x10] sm:$0xff]
  %v58 = vld [vmem:[%s2 + $0x18] sm:$0xff]
  %v59 = vld [vmem:[%s2 + $0x20] sm:$0xff]
  %v60 = vld [vmem:[%s2 + $0x28] sm:$0xff]
  %v61 = vld [vmem:[%s2 + $0x30] sm:$0xff]
  %v62 = vld [vmem:[%s2 + $0x38] sm:$0xff]
  %v63 = vld [vmem:[%s2 + $0x40] sm:$0xff]
  %v64 = vld [vmem:[%s2 + $0x48] sm:$0xff]
  %v65 = vld [vmem:[%s2 + $0x50] sm:$0xff]
  %v66 = vld [vmem:[%s2 + $0x58] sm:$0xff]
  %v67 = vld [vmem:[%s2 + $0x60] sm:$0xff]
  %v68 = vld [vmem:[%s2 + $0x68] sm:$0xff]
  %v69 = vld [vmem:[%s2 + $0x70] sm:$0xff]
  %v70 = vld [vmem:[%s2 + $0x78] sm:$0xff]
  %v71 = vld [vmem:[%s2 + $0x80] sm:$0xff]
  %v72 = vld [vmem:[%s2 + $0x88] sm:$0xff]
  %v73 = vld [vmem:[%s2 + $0x90] sm:$0xff]
  %v74 = vld [vmem:[%s2 + $0x98] sm:$0xff]
  %v75 = vld [vmem:[%s2 + $0xa0] sm:$0xff]
  %v76 = vld [vmem:[%s2 + $0xa8] sm:$0xff]
  %v77 = vld [vmem:[%s2 + $0xb0] sm:$0xff]
  %v78 = vld [vmem:[%s2 + $0xb8] sm:$0xff]
  %v79 = vld [vmem:[%s2 + $0xc0] sm:$0xff]
  %v80 = vld [vmem:[%s2 + $0xc8] sm:$0xff]
  %v81 = vld [vmem:[%s2 + $0xd0] sm:$0xff]
  %v82 = vld [vmem:[%s2 + $0xd8] sm:$0xff]
  %v83 = vld [vmem:[%s2 + $0xe0] sm:$0xff]
  %v84 = vld [vmem:[%s2 + $0xe8] sm:$0xff]
  %v85 = vld [vmem:[%s2 + $0xf0] sm:$0xff]
  %v86 = vld [vmem:[%s2 + $0xf8] sm:$0xff]
  %v87 = vld [vmem:[%s0] sm:$0xff]
  %v88 = vld [vmem:[%s0 + $0x8] sm:$0xff]
  %v89 = vld [vmem:[%s0 + $0x10] sm:$0xff]
  %v90 = vld [vmem:[%s0 + $0x18] sm:$0xff]
  %v91 = vld [vmem:[%s0 + $0x20] sm:$0xff]
  %v92 = vld [vmem:[%s0 + $0x28] sm:$0xff]
  %v93 = vld [vmem:[%s0 + $0x30] sm:$0xff]
  %v94 = vld [vmem:[%s0 + $0x38] sm:$0xff]
  %v95 = vld [vmem:[%s0 + $0x40] sm:$0xff]
  %v96 = vld [vmem:[%s0 + $0x48] sm:$0xff]
  %v97 = vld [vmem:[%s0 + $0x50] sm:$0xff]
  %v98 = vld [vmem:[%s0 + $0x58] sm:$0xff]
  %v99 = vld [vmem:[%s0 + $0x60] sm:$0xff]
  %v100 = vld [vmem:[%s0 + $0x68] sm:$0xff]
  %v101 = vld [vmem:[%s0 + $0x70] sm:$0xff]
  %v102 = vld [vmem:[%s0 + $0x78] sm:$0xff]
  %v103 = vld [vmem:[%s0 + $0x80] sm:$0xff]
  %v104 = vld [vmem:[%s0 + $0x88] sm:$0xff]
  %v105 = vld [vmem:[%s0 + $0x90] sm:$0xff]
  %v106 = vld [vmem:[%s0 + $0x98] sm:$0xff]
  %v107 = vld [vmem:[%s0 + $0xa0] sm:$0xff]
  %v108 = vld [vmem:[%s0 + $0xa8] sm:$0xff]
  %v109 = vld [vmem:[%s0 + $0xb0] sm:$0xff]
  %v110 = vld [vmem:[%s0 + $0xb8] sm:$0xff]
  %v111 = vld [vmem:[%s0 + $0xc0] sm:$0xff]
  %v112 = vld [vmem:[%s0 + $0xc8] sm:$0xff]
  %v113 = vld [vmem:[%s0 + $0xd0] sm:$0xff]
  %v114 = vld [vmem:[%s0 + $0xd8] sm:$0xff]
  %v115 = vld [vmem:[%s0 + $0xe0] sm:$0xff]
  %v116 = vld [vmem:[%s0 + $0xe8] sm:$0xff]
  %v117 = vld [vmem:[%s0 + $0xf0] sm:$0xff]
  %v118 = vld [vmem:[%s0 + $0xf8] sm:$0xff]
  %v119 = vld [vmem:[%s0 + $0x100] sm:$0xff]
  %v120 = vld [vmem:[%s0 + $0x108] sm:$0xff]
  %v121 = vld [vmem:[%s0 + $0x110] sm:$0xff]
  %v122 = vld [vmem:[%s0 + $0x118] sm:$0xff]
  %v123 = vld [vmem:[%s0 + $0x120] sm:$0xff]
  %v124 = vld [vmem:[%s0 + $0x128] sm:$0xff]
  %v125 = vld [vmem:[%s0 + $0x130] sm:$0xff]
  %v126 = vld [vmem:[%s0 + $0x138] sm:$0xff]
  %v127 = vld [vmem:[%s0 + $0x140] sm:$0xff]
  %v128 = vld [vmem:[%s0 + $0x148] sm:$0xff]
  %v129 = vld [vmem:[%s0 + $0x150] sm:$0xff]
  %v130 = vld [vmem:[%s0 + $0x158] sm:$0xff]
  %v131 = vld [vmem:[%s0 + $0x160] sm:$0xff]
  %v132 = vld [vmem:[%s0 + $0x168] sm:$0xff]
  %v133 = vld [vmem:[%s0 + $0x170] sm:$0xff]
  %v134 = vld [vmem:[%s0 + $0x178] sm:$0xff]
  %v135 = vld [vmem:[%s0 + $0x180] sm:$0xff]
  %v136 = vld [vmem:[%s0 + $0x188] sm:$0xff]
  %v137 = vld [vmem:[%s0 + $0x190] sm:$0xff]
  %v138 = vld [vmem:[%s0 + $0x198] sm:$0xff]
  %v139 = vld [vmem:[%s0 + $0x1a0] sm:$0xff]
  %v140 = vld [vmem:[%s0 + $0x1a8] sm:$0xff]
  %v141 = vld [vmem:[%s0 + $0x1b0] sm:$0xff]
  %v142 = vld [vmem:[%s0 + $0x1b8] sm:$0xff]
  %v143 = vld [vmem:[%s0 + $0x1c0] sm:$0xff]
  %v144 = vld [vmem:[%s0 + $0x1c8] sm:$0xff]
  %v145 = vld [vmem:[%s0 + $0x1d0] sm:$0xff]
  %v146 = vld [vmem:[%s0 + $0x1d8] sm:$0xff]
  %v147 = vld [vmem:[%s0 + $0x1e0] sm:$0xff]
  %v148 = vld [vmem:[%s0 + $0x1e8] sm:$0xff]
  %v149 = vld [vmem:[%s0 + $0x1f0] sm:$0xff]
  %v150 = vld [vmem:[%s0 + $0x1f8] sm:$0xff]
  %v151 = vadd.f32 %v23, %v55
  %v152 = vadd.f32 %v24, %v56
  %v153 = vadd.f32 %v25, %v57
  %v154 = vadd.f32 %v26, %v58
  %v155 = vadd.f32 %v27, %v59
  %v156 = vadd.f32 %v28, %v60
  %v157 = vadd.f32 %v29, %v61
  %v158 = vadd.f32 %v30, %v62
  %v159 = vadd.f32 %v31, %v63
  %v160 = vadd.f32 %v32, %v64
  %v161 = vadd.f32 %v33, %v65
  %v162 = vadd.f32 %v34, %v66
  %v163 = vadd.f32 %v35, %v67
  %v164 = vadd.f32 %v36, %v68
  %v165 = vadd.f32 %v37, %v69
  %v166 = vadd.f32 %v38, %v70
  %v167 = vadd.f32 %v39, %v71
  %v168 = vadd.f32 %v40, %v72
  %v169 = vadd.f32 %v41, %v73
  %v170 = vadd.f32 %v42, %v74
  %v171 = vadd.f32 %v43, %v75
  %v172 = vadd.f32 %v44, %v76
  %v173 = vadd.f32 %v45, %v77
  %v174 = vadd.f32 %v46, %v78
  %v175 = vadd.f32 %v47, %v79
  %v176 = vadd.f32 %v48, %v80
  %v177 = vadd.f32 %v49, %v81
  %v178 = vadd.f32 %v50, %v82
  %v179 = vadd.f32 %v51, %v83
  %v180 = vadd.f32 %v52, %v84
  %v181 = vadd.f32 %v53, %v85
  %v182 = vadd.f32 %v54, %v86
  %v183 = vld [vmem:[%s3] sm:$0xff]
  %v184 = vld [vmem:[%s3 + $0x8] sm:$0xff]
  %v185 = vld [vmem:[%s3 + $0x10] sm:$0xff]
  %v186 = vld [vmem:[%s3 + $0x18] sm:$0xff]
  %vm187 = vcmask 261120
  %v189 = vsel %vm187, %v23, 0
  %v192 = vsel %vm187, %v24, 0
  %v195 = vsel %vm187, %v25, 0
  %v198 = vsel %vm187, %v26, 0
  %v201 = vsel %vm187, %v27, 0
  %v204 = vsel %vm187, %v28, 0
  %v207 = vsel %vm187, %v29, 0
  %v210 = vsel %vm187, %v30, 0
  %v213 = vsel %vm187, %v31, 0
  %v216 = vsel %vm187, %v32, 0
  %v219 = vsel %vm187, %v33, 0
  %v222 = vsel %vm187, %v34, 0
  %v225 = vsel %vm187, %v35, 0
  %v228 = vsel %vm187, %v36, 0
  %v231 = vsel %vm187, %v37, 0
  %v234 = vsel %vm187, %v38, 0
  %v237 = vsel %vm187, %v39, 0
  %v240 = vsel %vm187, %v40, 0
  %v243 = vsel %vm187, %v41, 0
  %v246 = vsel %vm187, %v42, 0
  %v249 = vsel %vm187, %v43, 0
  %v252 = vsel %vm187, %v44, 0
  %v255 = vsel %vm187, %v45, 0
  %v258 = vsel %vm187, %v46, 0
  %v261 = vsel %vm187, %v47, 0
  %v264 = vsel %vm187, %v48, 0
  %v267 = vsel %vm187, %v49, 0
  %v270 = vsel %vm187, %v50, 0
  %v273 = vsel %vm187, %v51, 0
  %v276 = vsel %vm187, %v52, 0
  %v279 = vsel %vm187, %v53, 0
  %v282 = vsel %vm187, %v54, 0
  %284 = vmatprep.subr.mxu0 0.0
  %285 = vmatpush1.msra.mxu0 %v183
  %286 = vmatprep.subr.mxu0 0.0
  %287 = vmatpush1.msra.mxu0 %v184
  %288 = vmatprep.subr.mxu0 0.0
  %289 = vmatpush1.msra.mxu0 %v185
  %290 = vmatprep.subr.mxu0 0.0
  %291 = vmatpush1.msra.mxu0 %v186
  %292 = vmatprep.subr.mxu0 0.0
  %293 = vmatpush1.msra.mxu0 0.0
  %294 = vmatprep.subr.mxu0 0.0
  %295 = vmatpush1.msra.mxu0 0.0
  %296 = vmatprep.subr.mxu0 0.0
  %297 = vmatpush1.msra.mxu0 0.0
  %298 = vmatprep.subr.mxu0 0.0
  %299 = vmatpush1.msra.mxu0 0.0
  %300 = vmatprep.subr.mxu0 0.0
  %301 = vmatpush1.msra.mxu0 0.0
  %302 = vmatprep.subr.mxu0 0.0
  %303 = vmatpush1.msra.mxu0 0.0
  %304 = vmatprep.subr.mxu0 0.0
  %305 = vmatpush1.msra.mxu0 0.0
  %306 = vmatprep.subr.mxu0 0.0
  %307 = vmatpush1.msra.mxu0 0.0
  %308 = vmatprep.subr.mxu0 0.0
  %309 = vmatpush1.msra.mxu0 0.0
  %310 = vmatprep.subr.mxu0 0.0
  %311 = vmatpush1.msra.mxu0 0.0
  %312 = vmatprep.subr.mxu0 0.0
  %313 = vmatpush1.msra.mxu0 0.0
  %314 = vmatprep.subr.mxu0 0.0
  %315 = vmatpush1.msra.mxu0 0.0
  %316 = vmatprep.subr.mxu0 0.0
  %317 = vmatpush1.msra.mxu0 0.0
  %318 = vmatprep.subr.mxu0 0.0
  %319 = vmatpush1.msra.mxu0 0.0
  %320 = vmatprep.subr.mxu0 0.0
  %321 = vmatpush1.msra.mxu0 0.0
  %322 = vmatprep.subr.mxu0 0.0
  %323 = vmatpush1.msra.mxu0 0.0
  %324 = vmatprep.subr.mxu0 0.0
  %325 = vmatpush1.msra.mxu0 0.0
  %326 = vmatprep.subr.mxu0 0.0
  %327 = vmatpush1.msra.mxu0 0.0
  %328 = vmatprep.subr.mxu0 0.0
  %329 = vmatpush1.msra.mxu0 0.0
  %330 = vmatprep.subr.mxu0 0.0
  %331 = vmatpush1.msra.mxu0 0.0
  %332 = vmatprep.subr.mxu0 0.0
  %333 = vmatpush1.msra.mxu0 0.0
  %334 = vmatprep.subr.mxu0 0.0
  %335 = vmatpush1.msra.mxu0 0.0
  %336 = vmatprep.subr.mxu0 0.0
  %337 = vmatpush1.msra.mxu0 0.0
  %338 = vmatprep.subr.mxu0 0.0
  %339 = vmatpush1.msra.mxu0 0.0
  %340 = vmatprep.subr.mxu0 0.0
  %341 = vmatpush1.msra.mxu0 0.0
  %342 = vmatprep.subr.mxu0 0.0
  %343 = vmatpush1.msra.mxu0 0.0
  %344 = vmatprep.subr.mxu0 0.0
  %345 = vmatpush1.msra.mxu0 0.0
  %346 = vmatprep.subr.mxu0 0.0
  %347 = vmatpush1.msra.mxu0 0.0
  %348 = vmatprep.mubr.f32.mxu0 0.0
  %349 = vmatmul.mubr.f32.gmra.mrb[0].mxu0 %v189
  %v350 = vpop.f32.mrb[0].mxu0
  %v351 = vadd.f32 0.0, %v350
  %v352 = vpop.f32.mrb[0].mxu0
  %353 = vmatprep.mubr.f32.mxu0 0.0
  %354 = vmatmul.mubr.f32.gmra.mrb[0].mxu0 %v192
  %v355 = vpop.f32.mrb[0].mxu0
  %v356 = vadd.f32 0.0, %v355
  %v357 = vpop.f32.mrb[0].mxu0
  %358 = vmatprep.mubr.f32.mxu0 0.0
  %359 = vmatmul.mubr.f32.gmra.mrb[0].mxu0 %v195
  %v360 = vpop.f32.mrb[0].mxu0
  %v361 = vadd.f32 0.0, %v360
  %v362 = vpop.f32.mrb[0].mxu0
  %363 = vmatprep.mubr.f32.mxu0 0.0
  %364 = vmatmul.mubr.f32.gmra.mrb[0].mxu0 %v198
  %v365 = vpop.f32.mrb[0].mxu0
  %v366 = vadd.f32 0.0, %v365
  %v367 = vpop.f32.mrb[0].mxu0
  %368 = vmatprep.mubr.f32.mxu0 0.0
  %369 = vmatmul.mubr.f32.gmra.mrb[0].mxu0 %v201
  %v370 = vpop.f32.mrb[0].mxu0
  %v371 = vadd.f32 0.0, %v370
  %v372 = vpop.f32.mrb[0].mxu0
  %373 = vmatprep.mubr.f32.mxu0 0.0
  %374 = vmatmul.mubr.f32.gmra.mrb[0].mxu0 %v204
  %v375 = vpop.f32.mrb[0].mxu0
  %v376 = vadd.f32 0.0, %v375
  %v377 = vpop.f32.mrb[0].mxu0
  %378 = vmatprep.mubr.f32.mxu0 0.0
  %379 = vmatmul.mubr.f32.gmra.mrb[0].mxu0 %v207
  %v380 = vpop.f32.mrb[0].mxu0
  %v381 = vadd.f32 0.0, %v380
  %v382 = vpop.f32.mrb[0].mxu0
  %383 = vmatprep.mubr.f32.mxu0 0.0
  %384 = vmatmul.mubr.f32.gmra.mrb[0].mxu0 %v210
  %v385 = vpop.f32.mrb[0].mxu0
  %v386 = vadd.f32 0.0, %v385
  %v387 = vpop.f32.mrb[0].mxu0
  %388 = vmatprep.mubr.f32.mxu0 0.0
  %389 = vmatmul.mubr.f32.gmra.mrb[0].mxu0 %v213
  %v390 = vpop.f32.mrb[0].mxu0
  %v391 = vadd.f32 0.0, %v390
  %v392 = vpop.f32.mrb[0].mxu0
  %393 = vmatprep.mubr.f32.mxu0 0.0
  %394 = vmatmul.mubr.f32.gmra.mrb[0].mxu0 %v216
  %v395 = vpop.f32.mrb[0].mxu0
  %v396 = vadd.f32 0.0, %v395
  %v397 = vpop.f32.mrb[0].mxu0
  %398 = vmatprep.mubr.f32.mxu0 0.0
  %399 = vmatmul.mubr.f32.gmra.mrb[0].mxu0 %v219
  %v400 = vpop.f32.mrb[0].mxu0
  %v401 = vadd.f32 0.0, %v400
  %v402 = vpop.f32.mrb[0].mxu0
  %403 = vmatprep.mubr.f32.mxu0 0.0
  %404 = vmatmul.mubr.f32.gmra.mrb[0].mxu0 %v222
  %v405 = vpop.f32.mrb[0].mxu0
  %v406 = vadd.f32 0.0, %v405
  %v407 = vpop.f32.mrb[0].mxu0
  %408 = vmatprep.mubr.f32.mxu0 0.0
  %409 = vmatmul.mubr.f32.gmra.mrb[0].mxu0 %v225
  %v410 = vpop.f32.mrb[0].mxu0
  %v411 = vadd.f32 0.0, %v410
  %v412 = vpop.f32.mrb[0].mxu0
  %413 = vmatprep.mubr.f32.mxu0 0.0
  %414 = vmatmul.mubr.f32.gmra.mrb[0].mxu0 %v228
  %v415 = vpop.f32.mrb[0].mxu0
  %v416 = vadd.f32 0.0, %v415
  %v417 = vpop.f32.mrb[0].mxu0
  %418 = vmatprep.mubr.f32.mxu0 0.0
  %419 = vmatmul.mubr.f32.gmra.mrb[0].mxu0 %v231
  %v420 = vpop.f32.mrb[0].mxu0
  %v421 = vadd.f32 0.0, %v420
  %v422 = vpop.f32.mrb[0].mxu0
  %423 = vmatprep.mubr.f32.mxu0 0.0
  %424 = vmatmul.mubr.f32.gmra.mrb[0].mxu0 %v234
  %v425 = vpop.f32.mrb[0].mxu0
  %v426 = vadd.f32 0.0, %v425
  %v427 = vpop.f32.mrb[0].mxu0
  %428 = vmatprep.mubr.f32.mxu0 0.0
  %429 = vmatmul.mubr.f32.gmra.mrb[0].mxu0 %v237
  %v430 = vpop.f32.mrb[0].mxu0
  %v431 = vadd.f32 0.0, %v430
  %v432 = vpop.f32.mrb[0].mxu0
  %433 = vmatprep.mubr.f32.mxu0 0.0
  %434 = vmatmul.mubr.f32.gmra.mrb[0].mxu0 %v240
  %v435 = vpop.f32.mrb[0].mxu0
  %v436 = vadd.f32 0.0, %v435
  %v437 = vpop.f32.mrb[0].mxu0
  %438 = vmatprep.mubr.f32.mxu0 0.0
  %439 = vmatmul.mubr.f32.gmra.mrb[0].mxu0 %v243
  %v440 = vpop.f32.mrb[0].mxu0
  %v441 = vadd.f32 0.0, %v440
  %v442 = vpop.f32.mrb[0].mxu0
  %443 = vmatprep.mubr.f32.mxu0 0.0
  %444 = vmatmul.mubr.f32.gmra.mrb[0].mxu0 %v246
  %v445 = vpop.f32.mrb[0].mxu0
  %v446 = vadd.f32 0.0, %v445
  %v447 = vpop.f32.mrb[0].mxu0
  %448 = vmatprep.mubr.f32.mxu0 0.0
  %449 = vmatmul.mubr.f32.gmra.mrb[0].mxu0 %v249
  %v450 = vpop.f32.mrb[0].mxu0
  %v451 = vadd.f32 0.0, %v450
  %v452 = vpop.f32.mrb[0].mxu0
  %453 = vmatprep.mubr.f32.mxu0 0.0
  %454 = vmatmul.mubr.f32.gmra.mrb[0].mxu0 %v252
  %v455 = vpop.f32.mrb[0].mxu0
  %v456 = vadd.f32 0.0, %v455
  %v457 = vpop.f32.mrb[0].mxu0
  %458 = vmatprep.mubr.f32.mxu0 0.0
  %459 = vmatmul.mubr.f32.gmra.mrb[0].mxu0 %v255
  %v460 = vpop.f32.mrb[0].mxu0
  %v461 = vadd.f32 0.0, %v460
  %v462 = vpop.f32.mrb[0].mxu0
  %463 = vmatprep.mubr.f32.mxu0 0.0
  %464 = vmatmul.mubr.f32.gmra.mrb[0].mxu0 %v258
  %v465 = vpop.f32.mrb[0].mxu0
  %v466 = vadd.f32 0.0, %v465
  %v467 = vpop.f32.mrb[0].mxu0
  %468 = vmatprep.mubr.f32.mxu0 0.0
  %469 = vmatmul.mubr.f32.gmra.mrb[0].mxu0 %v261
  %v470 = vpop.f32.mrb[0].mxu0
  %v471 = vadd.f32 0.0, %v470
  %v472 = vpop.f32.mrb[0].mxu0
  %473 = vmatprep.mubr.f32.mxu0 0.0
  %474 = vmatmul.mubr.f32.gmra.mrb[0].mxu0 %v264
  %v475 = vpop.f32.mrb[0].mxu0
  %v476 = vadd.f32 0.0, %v475
  %v477 = vpop.f32.mrb[0].mxu0
  %478 = vmatprep.mubr.f32.mxu0 0.0
  %479 = vmatmul.mubr.f32.gmra.mrb[0].mxu0 %v267
  %v480 = vpop.f32.mrb[0].mxu0
  %v481 = vadd.f32 0.0, %v480
  %v482 = vpop.f32.mrb[0].mxu0
  %483 = vmatprep.mubr.f32.mxu0 0.0
  %484 = vmatmul.mubr.f32.gmra.mrb[0].mxu0 %v270
  %v485 = vpop.f32.mrb[0].mxu0
  %v486 = vadd.f32 0.0, %v485
  %v487 = vpop.f32.mrb[0].mxu0
  %488 = vmatprep.mubr.f32.mxu0 0.0
  %489 = vmatmul.mubr.f32.gmra.mrb[0].mxu0 %v273
  %v490 = vpop.f32.mrb[0].mxu0
  %v491 = vadd.f32 0.0, %v490
  %v492 = vpop.f32.mrb[0].mxu0
  %493 = vmatprep.mubr.f32.mxu0 0.0
  %494 = vmatmul.mubr.f32.gmra.mrb[0].mxu0 %v276
  %v495 = vpop.f32.mrb[0].mxu0
  %v496 = vadd.f32 0.0, %v495
  %v497 = vpop.f32.mrb[0].mxu0
  %498 = vmatprep.mubr.f32.mxu0 0.0
  %499 = vmatmul.mubr.f32.gmra.mrb[0].mxu0 %v279
  %v500 = vpop.f32.mrb[0].mxu0
  %v501 = vadd.f32 0.0, %v500
  %v502 = vpop.f32.mrb[0].mxu0
  %503 = vmatprep.mubr.f32.mxu0 0.0
  %504 = vmatmul.mubr.f32.gmra.mrb[0].mxu0 %v282
  %v505 = vpop.f32.mrb[0].mxu0
  %v506 = vadd.f32 0.0, %v505
  %v507 = vpop.f32.mrb[0].mxu0
  %508 = vdwg.mxu0
  %v509 = vld [vmem:[%s4] sm:$0xff]
  %v510 = vld [vmem:[%s4 + $0x8] sm:$0xff]
  %v511 = vld [vmem:[%s4 + $0x10] sm:$0xff]
  %v512 = vld [vmem:[%s4 + $0x18] sm:$0xff]
  %v514 = vsel %vm187, %v55, 0
  %v517 = vsel %vm187, %v56, 0
  %v520 = vsel %vm187, %v57, 0
  %v523 = vsel %vm187, %v58, 0
  %v526 = vsel %vm187, %v59, 0
  %v529 = vsel %vm187, %v60, 0
  %v532 = vsel %vm187, %v61, 0
  %v535 = vsel %vm187, %v62, 0
  %v538 = vsel %vm187, %v63, 0
  %v541 = vsel %vm187, %v64, 0
  %v544 = vsel %vm187, %v65, 0
  %v547 = vsel %vm187, %v66, 0
  %v550 = vsel %vm187, %v67, 0
  %v553 = vsel %vm187, %v68, 0
  %v556 = vsel %vm187, %v69, 0
  %v559 = vsel %vm187, %v70, 0
  %v562 = vsel %vm187, %v71, 0
  %v565 = vsel %vm187, %v72, 0
  %v568 = vsel %vm187, %v73, 0
  %v571 = vsel %vm187, %v74, 0
  %v574 = vsel %vm187, %v75, 0
  %v577 = vsel %vm187, %v76, 0
  %v580 = vsel %vm187, %v77, 0
  %v583 = vsel %vm187, %v78, 0
  %v586 = vsel %vm187, %v79, 0
  %v589 = vsel %vm187, %v80, 0
  %v592 = vsel %vm187, %v81, 0
  %v595 = vsel %vm187, %v82, 0
  %v598 = vsel %vm187, %v83, 0
  %v601 = vsel %vm187, %v84, 0
  %v604 = vsel %vm187, %v85, 0
  %v607 = vsel %vm187, %v86, 0
  %609 = vmatprep.subr.mxu0 0.0
  %610 = vmatpush1.msra.mxu0 %v509
  %611 = vmatprep.subr.mxu0 0.0
  %612 = vmatpush1.msra.mxu0 %v510
  %613 = vmatprep.subr.mxu0 0.0
  %614 = vmatpush1.msra.mxu0 %v511
  %615 = vmatprep.subr.mxu0 0.0
  %616 = vmatpush1.msra.mxu0 %v512
  %617 = vmatprep.subr.mxu0 0.0
  %618 = vmatpush1.msra.mxu0 0.0
  %619 = vmatprep.subr.mxu0 0.0
  %620 = vmatpush1.msra.mxu0 0.0
  %621 = vmatprep.subr.mxu0 0.0
  %622 = vmatpush1.msra.mxu0 0.0
  %623 = vmatprep.subr.mxu0 0.0
  %624 = vmatpush1.msra.mxu0 0.0
  %625 = vmatprep.subr.mxu0 0.0
  %626 = vmatpush1.msra.mxu0 0.0
  %627 = vmatprep.subr.mxu0 0.0
  %628 = vmatpush1.msra.mxu0 0.0
  %629 = vmatprep.subr.mxu0 0.0
  %630 = vmatpush1.msra.mxu0 0.0
  %631 = vmatprep.subr.mxu0 0.0
  %632 = vmatpush1.msra.mxu0 0.0
  %633 = vmatprep.subr.mxu0 0.0
  %634 = vmatpush1.msra.mxu0 0.0
  %635 = vmatprep.subr.mxu0 0.0
  %636 = vmatpush1.msra.mxu0 0.0
  %637 = vmatprep.subr.mxu0 0.0
  %638 = vmatpush1.msra.mxu0 0.0
  %639 = vmatprep.subr.mxu0 0.0
  %640 = vmatpush1.msra.mxu0 0.0
  %641 = vmatprep.subr.mxu0 0.0
  %642 = vmatpush1.msra.mxu0 0.0
  %643 = vmatprep.subr.mxu0 0.0
  %644 = vmatpush1.msra.mxu0 0.0
  %645 = vmatprep.subr.mxu0 0.0
  %646 = vmatpush1.msra.mxu0 0.0
  %647 = vmatprep.subr.mxu0 0.0
  %648 = vmatpush1.msra.mxu0 0.0
  %649 = vmatprep.subr.mxu0 0.0
  %650 = vmatpush1.msra.mxu0 0.0
  %651 = vmatprep.subr.mxu0 0.0
  %652 = vmatpush1.msra.mxu0 0.0
  %653 = vmatprep.subr.mxu0 0.0
  %654 = vmatpush1.msra.mxu0 0.0
  %655 = vmatprep.subr.mxu0 0.0
  %656 = vmatpush1.msra.mxu0 0.0
  %657 = vmatprep.subr.mxu0 0.0
  %658 = vmatpush1.msra.mxu0 0.0
  %659 = vmatprep.subr.mxu0 0.0
  %660 = vmatpush1.msra.mxu0 0.0
  %661 = vmatprep.subr.mxu0 0.0
  %662 = vmatpush1.msra.mxu0 0.0
  %663 = vmatprep.subr.mxu0 0.0
  %664 = vmatpush1.msra.mxu0 0.0
  %665 = vmatprep.subr.mxu0 0.0
  %666 = vmatpush1.msra.mxu0 0.0
  %667 = vmatprep.subr.mxu0 0.0
  %668 = vmatpush1.msra.mxu0 0.0
  %669 = vmatprep.subr.mxu0 0.0
  %670 = vmatpush1.msra.mxu0 0.0
  %671 = vmatprep.subr.mxu0 0.0
  %672 = vmatpush1.msra.mxu0 0.0
  %673 = vmatprep.mubr.f32.mxu0 0.0
  %674 = vmatmul.mubr.f32.gmra.mrb[0].mxu0 %v514
  %v675 = vpop.f32.mrb[0].mxu0
  %v676 = vadd.f32 0.0, %v675
  %v677 = vpop.f32.mrb[0].mxu0
  %678 = vmatprep.mubr.f32.mxu0 0.0
  %679 = vmatmul.mubr.f32.gmra.mrb[0].mxu0 %v517
  %v680 = vpop.f32.mrb[0].mxu0
  %v681 = vadd.f32 0.0, %v680
  %v682 = vpop.f32.mrb[0].mxu0
  %683 = vmatprep.mubr.f32.mxu0 0.0
  %684 = vmatmul.mubr.f32.gmra.mrb[0].mxu0 %v520
  %v685 = vpop.f32.mrb[0].mxu0
  %v686 = vadd.f32 0.0, %v685
  %v687 = vpop.f32.mrb[0].mxu0
  %688 = vmatprep.mubr.f32.mxu0 0.0
  %689 = vmatmul.mubr.f32.gmra.mrb[0].mxu0 %v523
  %v690 = vpop.f32.mrb[0].mxu0
  %v691 = vadd.f32 0.0, %v690
  %v692 = vpop.f32.mrb[0].mxu0
  %693 = vmatprep.mubr.f32.mxu0 0.0
  %694 = vmatmul.mubr.f32.gmra.mrb[0].mxu0 %v526
  %v695 = vpop.f32.mrb[0].mxu0
  %v696 = vadd.f32 0.0, %v695
  %v697 = vpop.f32.mrb[0].mxu0
  %698 = vmatprep.mubr.f32.mxu0 0.0
  %699 = vmatmul.mubr.f32.gmra.mrb[0].mxu0 %v529
  %v700 = vpop.f32.mrb[0].mxu0
  %v701 = vadd.f32 0.0, %v700
  %v702 = vpop.f32.mrb[0].mxu0
  %703 = vmatprep.mubr.f32.mxu0 0.0
  %704 = vmatmul.mubr.f32.gmra.mrb[0].mxu0 %v532
  %v705 = vpop.f32.mrb[0].mxu0
  %v706 = vadd.f32 0.0, %v705
  %v707 = vpop.f32.mrb[0].mxu0
  %708 = vmatprep.mubr.f32.mxu0 0.0
  %709 = vmatmul.mubr.f32.gmra.mrb[0].mxu0 %v535
  %v710 = vpop.f32.mrb[0].mxu0
  %v711 = vadd.f32 0.0, %v710
  %v712 = vpop.f32.mrb[0].mxu0
  %713 = vmatprep.mubr.f32.mxu0 0.0
  %714 = vmatmul.mubr.f32.gmra.mrb[0].mxu0 %v538
  %v715 = vpop.f32.mrb[0].mxu0
  %v716 = vadd.f32 0.0, %v715
  %v717 = vpop.f32.mrb[0].mxu0
  %718 = vmatprep.mubr.f32.mxu0 0.0
  %719 = vmatmul.mubr.f32.gmra.mrb[0].mxu0 %v541
  %v720 = vpop.f32.mrb[0].mxu0
  %v721 = vadd.f32 0.0, %v720
  %v722 = vpop.f32.mrb[0].mxu0
  %723 = vmatprep.mubr.f32.mxu0 0.0
  %724 = vmatmul.mubr.f32.gmra.mrb[0].mxu0 %v544
  %v725 = vpop.f32.mrb[0].mxu0
  %v726 = vadd.f32 0.0, %v725
  %v727 = vpop.f32.mrb[0].mxu0
  %728 = vmatprep.mubr.f32.mxu0 0.0
  %729 = vmatmul.mubr.f32.gmra.mrb[0].mxu0 %v547
  %v730 = vpop.f32.mrb[0].mxu0
  %v731 = vadd.f32 0.0, %v730
  %v732 = vpop.f32.mrb[0].mxu0
  %733 = vmatprep.mubr.f32.mxu0 0.0
  %734 = vmatmul.mubr.f32.gmra.mrb[0].mxu0 %v550
  %v735 = vpop.f32.mrb[0].mxu0
  %v736 = vadd.f32 0.0, %v735
  %v737 = vpop.f32.mrb[0].mxu0
  %738 = vmatprep.mubr.f32.mxu0 0.0
  %739 = vmatmul.mubr.f32.gmra.mrb[0].mxu0 %v553
  %v740 = vpop.f32.mrb[0].mxu0
  %v741 = vadd.f32 0.0, %v740
  %v742 = vpop.f32.mrb[0].mxu0
  %743 = vmatprep.mubr.f32.mxu0 0.0
  %744 = vmatmul.mubr.f32.gmra.mrb[0].mxu0 %v556
  %v745 = vpop.f32.mrb[0].mxu0
  %v746 = vadd.f32 0.0, %v745
  %v747 = vpop.f32.mrb[0].mxu0
  %748 = vmatprep.mubr.f32.mxu0 0.0
  %749 = vmatmul.mubr.f32.gmra.mrb[0].mxu0 %v559
  %v750 = vpop.f32.mrb[0].mxu0
  %v751 = vadd.f32 0.0, %v750
  %v752 = vpop.f32.mrb[0].mxu0
  %753 = vmatprep.mubr.f32.mxu0 0.0
  %754 = vmatmul.mubr.f32.gmra.mrb[0].mxu0 %v562
  %v755 = vpop.f32.mrb[0].mxu0
  %v756 = vadd.f32 0.0, %v755
  %v757 = vpop.f32.mrb[0].mxu0
  %758 = vmatprep.mubr.f32.mxu0 0.0
  %759 = vmatmul.mubr.f32.gmra.mrb[0].mxu0 %v565
  %v760 = vpop.f32.mrb[0].mxu0
  %v761 = vadd.f32 0.0, %v760
  %v762 = vpop.f32.mrb[0].mxu0
  %763 = vmatprep.mubr.f32.mxu0 0.0
  %764 = vmatmul.mubr.f32.gmra.mrb[0].mxu0 %v568
  %v765 = vpop.f32.mrb[0].mxu0
  %v766 = vadd.f32 0.0, %v765
  %v767 = vpop.f32.mrb[0].mxu0
  %768 = vmatprep.mubr.f32.mxu0 0.0
  %769 = vmatmul.mubr.f32.gmra.mrb[0].mxu0 %v571
  %v770 = vpop.f32.mrb[0].mxu0
  %v771 = vadd.f32 0.0, %v770
  %v772 = vpop.f32.mrb[0].mxu0
  %773 = vmatprep.mubr.f32.mxu0 0.0
  %774 = vmatmul.mubr.f32.gmra.mrb[0].mxu0 %v574
  %v775 = vpop.f32.mrb[0].mxu0
  %v776 = vadd.f32 0.0, %v775
  %v777 = vpop.f32.mrb[0].mxu0
  %778 = vmatprep.mubr.f32.mxu0 0.0
  %779 = vmatmul.mubr.f32.gmra.mrb[0].mxu0 %v577
  %v780 = vpop.f32.mrb[0].mxu0
  %v781 = vadd.f32 0.0, %v780
  %v782 = vpop.f32.mrb[0].mxu0
  %783 = vmatprep.mubr.f32.mxu0 0.0
  %784 = vmatmul.mubr.f32.gmra.mrb[0].mxu0 %v580
  %v785 = vpop.f32.mrb[0].mxu0
  %v786 = vadd.f32 0.0, %v785
  %v787 = vpop.f32.mrb[0].mxu0
  %788 = vmatprep.mubr.f32.mxu0 0.0
  %789 = vmatmul.mubr.f32.gmra.mrb[0].mxu0 %v583
  %v790 = vpop.f32.mrb[0].mxu0
  %v791 = vadd.f32 0.0, %v790
  %v792 = vpop.f32.mrb[0].mxu0
  %793 = vmatprep.mubr.f32.mxu0 0.0
  %794 = vmatmul.mubr.f32.gmra.mrb[0].mxu0 %v586
  %v795 = vpop.f32.mrb[0].mxu0
  %v796 = vadd.f32 0.0, %v795
  %v797 = vpop.f32.mrb[0].mxu0
  %798 = vmatprep.mubr.f32.mxu0 0.0
  %799 = vmatmul.mubr.f32.gmra.mrb[0].mxu0 %v589
  %v800 = vpop.f32.mrb[0].mxu0
  %v801 = vadd.f32 0.0, %v800
  %v802 = vpop.f32.mrb[0].mxu0
  %803 = vmatprep.mubr.f32.mxu0 0.0
  %804 = vmatmul.mubr.f32.gmra.mrb[0].mxu0 %v592
  %v805 = vpop.f32.mrb[0].mxu0
  %v806 = vadd.f32 0.0, %v805
  %v807 = vpop.f32.mrb[0].mxu0
  %808 = vmatprep.mubr.f32.mxu0 0.0
  %809 = vmatmul.mubr.f32.gmra.mrb[0].mxu0 %v595
  %v810 = vpop.f32.mrb[0].mxu0
  %v811 = vadd.f32 0.0, %v810
  %v812 = vpop.f32.mrb[0].mxu0
  %813 = vmatprep.mubr.f32.mxu0 0.0
  %814 = vmatmul.mubr.f32.gmra.mrb[0].mxu0 %v598
  %v815 = vpop.f32.mrb[0].mxu0
  %v816 = vadd.f32 0.0, %v815
  %v817 = vpop.f32.mrb[0].mxu0
  %818 = vmatprep.mubr.f32.mxu0 0.0
  %819 = vmatmul.mubr.f32.gmra.mrb[0].mxu0 %v601
  %v820 = vpop.f32.mrb[0].mxu0
  %v821 = vadd.f32 0.0, %v820
  %v822 = vpop.f32.mrb[0].mxu0
  %823 = vmatprep.mubr.f32.mxu0 0.0
  %824 = vmatmul.mubr.f32.gmra.mrb[0].mxu0 %v604
  %v825 = vpop.f32.mrb[0].mxu0
  %v826 = vadd.f32 0.0, %v825
  %v827 = vpop.f32.mrb[0].mxu0
  %828 = vmatprep.mubr.f32.mxu0 0.0
  %829 = vmatmul.mubr.f32.gmra.mrb[0].mxu0 %v607
  %v830 = vpop.f32.mrb[0].mxu0
  %v831 = vadd.f32 0.0, %v830
  %v832 = vpop.f32.mrb[0].mxu0
  %833 = vdwg.mxu0
  %866 = vrot.lane.b32.xlu0 %v676, 32
  %v867 = vpop.permute.xlu0 %866
  %868 = vrot.lane.b32.xlu0 %v681, 32
  %v869 = vpop.permute.xlu0 %868
  %870 = vrot.lane.b32.xlu0 %v686, 32
  %v871 = vpop.permute.xlu0 %870
  %872 = vrot.lane.b32.xlu0 %v691, 32
  %v873 = vpop.permute.xlu0 %872
  %874 = vrot.lane.b32.xlu0 %v696, 32
  %v875 = vpop.permute.xlu0 %874
  %876 = vrot.lane.b32.xlu0 %v701, 32
  %v877 = vpop.permute.xlu0 %876
  %878 = vrot.lane.b32.xlu0 %v706, 32
  %v879 = vpop.permute.xlu0 %878
  %880 = vrot.lane.b32.xlu0 %v711, 32
  %v881 = vpop.permute.xlu0 %880
  %882 = vrot.lane.b32.xlu0 %v716, 32
  %v883 = vpop.permute.xlu0 %882
  %884 = vrot.lane.b32.xlu0 %v721, 32
  %v885 = vpop.permute.xlu0 %884
  %886 = vrot.lane.b32.xlu0 %v726, 32
  %v887 = vpop.permute.xlu0 %886
  %888 = vrot.lane.b32.xlu0 %v731, 32
  %v889 = vpop.permute.xlu0 %888
  %890 = vrot.lane.b32.xlu0 %v736, 32
  %v891 = vpop.permute.xlu0 %890
  %892 = vrot.lane.b32.xlu0 %v741, 32
  %v893 = vpop.permute.xlu0 %892
  %894 = vrot.lane.b32.xlu0 %v746, 32
  %v895 = vpop.permute.xlu0 %894
  %896 = vrot.lane.b32.xlu0 %v751, 32
  %v897 = vpop.permute.xlu0 %896
  %898 = vrot.lane.b32.xlu0 %v756, 32
  %v899 = vpop.permute.xlu0 %898
  %900 = vrot.lane.b32.xlu0 %v761, 32
  %v901 = vpop.permute.xlu0 %900
  %902 = vrot.lane.b32.xlu0 %v766, 32
  %v903 = vpop.permute.xlu0 %902
  %904 = vrot.lane.b32.xlu0 %v771, 32
  %v905 = vpop.permute.xlu0 %904
  %906 = vrot.lane.b32.xlu0 %v776, 32
  %v907 = vpop.permute.xlu0 %906
  %908 = vrot.lane.b32.xlu0 %v781, 32
  %v909 = vpop.permute.xlu0 %908
  %910 = vrot.lane.b32.xlu0 %v786, 32
  %v911 = vpop.permute.xlu0 %910
  %912 = vrot.lane.b32.xlu0 %v791, 32
  %v913 = vpop.permute.xlu0 %912
  %914 = vrot.lane.b32.xlu0 %v796, 32
  %v915 = vpop.permute.xlu0 %914
  %916 = vrot.lane.b32.xlu0 %v801, 32
  %v917 = vpop.permute.xlu0 %916
  %918 = vrot.lane.b32.xlu0 %v806, 32
  %v919 = vpop.permute.xlu0 %918
  %920 = vrot.lane.b32.xlu0 %v811, 32
  %v921 = vpop.permute.xlu0 %920
  %922 = vrot.lane.b32.xlu0 %v816, 32
  %v923 = vpop.permute.xlu0 %922
  %924 = vrot.lane.b32.xlu0 %v821, 32
  %v925 = vpop.permute.xlu0 %924
  %926 = vrot.lane.b32.xlu0 %v826, 32
  %v927 = vpop.permute.xlu0 %926
  %928 = vrot.lane.b32.xlu0 %v831, 32
  %v929 = vpop.permute.xlu0 %928
  %v962 = vsel %vm187, %v351, %v867
  %v963 = vsel %vm187, %v356, %v869
  %v964 = vsel %vm187, %v361, %v871
  %v965 = vsel %vm187, %v366, %v873
  %v966 = vsel %vm187, %v371, %v875
  %v967 = vsel %vm187, %v376, %v877
  %v968 = vsel %vm187, %v381, %v879
  %v969 = vsel %vm187, %v386, %v881
  %v970 = vsel %vm187, %v391, %v883
  %v971 = vsel %vm187, %v396, %v885
  %v972 = vsel %vm187, %v401, %v887
  %v973 = vsel %vm187, %v406, %v889
  %v974 = vsel %vm187, %v411, %v891
  %v975 = vsel %vm187, %v416, %v893
  %v976 = vsel %vm187, %v421, %v895
  %v977 = vsel %vm187, %v426, %v897
  %v978 = vsel %vm187, %v431, %v899
  %v979 = vsel %vm187, %v436, %v901
  %v980 = vsel %vm187, %v441, %v903
  %v981 = vsel %vm187, %v446, %v905
  %v982 = vsel %vm187, %v451, %v907
  %v983 = vsel %vm187, %v456, %v909
  %v984 = vsel %vm187, %v461, %v911
  %v985 = vsel %vm187, %v466, %v913
  %v986 = vsel %vm187, %v471, %v915
  %v987 = vsel %vm187, %v476, %v917
  %v988 = vsel %vm187, %v481, %v919
  %v989 = vsel %vm187, %v486, %v921
  %v990 = vsel %vm187, %v491, %v923
  %v991 = vsel %vm187, %v496, %v925
  %v992 = vsel %vm187, %v501, %v927
  %v993 = vsel %vm187, %v506, %v929
  %994 = vmatprep.subr.mxu0 0.0
  %995 = vmatpush1.msra.mxu0 %v151
  %996 = vmatprep.subr.mxu0 0.0
  %997 = vmatpush1.msra.mxu0 %v152
  %998 = vmatprep.subr.mxu0 0.0
  %999 = vmatpush1.msra.mxu0 %v153
  %1000 = vmatprep.subr.mxu0 0.0
  %1001 = vmatpush1.msra.mxu0 %v154
  %1002 = vmatprep.subr.mxu0 0.0
  %1003 = vmatpush1.msra.mxu0 %v155
  %1004 = vmatprep.subr.mxu0 0.0
  %1005 = vmatpush1.msra.mxu0 %v156
  %1006 = vmatprep.subr.mxu0 0.0
  %1007 = vmatpush1.msra.mxu0 %v157
  %1008 = vmatprep.subr.mxu0 0.0
  %1009 = vmatpush1.msra.mxu0 %v158
  %1010 = vmatprep.subr.mxu0 0.0
  %1011 = vmatpush1.msra.mxu0 %v159
  %1012 = vmatprep.subr.mxu0 0.0
  %1013 = vmatpush1.msra.mxu0 %v160
  %1014 = vmatprep.subr.mxu0 0.0
  %1015 = vmatpush1.msra.mxu0 %v161
  %1016 = vmatprep.subr.mxu0 0.0
  %1017 = vmatpush1.msra.mxu0 %v162
  %1018 = vmatprep.subr.mxu0 0.0
  %1019 = vmatpush1.msra.mxu0 %v163
  %1020 = vmatprep.subr.mxu0 0.0
  %1021 = vmatpush1.msra.mxu0 %v164
  %1022 = vmatprep.subr.mxu0 0.0
  %1023 = vmatpush1.msra.mxu0 %v165
  %1024 = vmatprep.subr.mxu0 0.0
  %1025 = vmatpush1.msra.mxu0 %v166
  %1026 = vmatprep.subr.mxu0 0.0
  %1027 = vmatpush1.msra.mxu0 %v167
  %1028 = vmatprep.subr.mxu0 0.0
  %1029 = vmatpush1.msra.mxu0 %v168
  %1030 = vmatprep.subr.mxu0 0.0
  %1031 = vmatpush1.msra.mxu0 %v169
  %1032 = vmatprep.subr.mxu0 0.0
  %1033 = vmatpush1.msra.mxu0 %v170
  %1034 = vmatprep.subr.mxu0 0.0
  %1035 = vmatpush1.msra.mxu0 %v171
  %1036 = vmatprep.subr.mxu0 0.0
  %1037 = vmatpush1.msra.mxu0 %v172
  %1038 = vmatprep.subr.mxu0 0.0
  %1039 = vmatpush1.msra.mxu0 %v173
  %1040 = vmatprep.subr.mxu0 0.0
  %1041 = vmatpush1.msra.mxu0 %v174
  %1042 = vmatprep.subr.mxu0 0.0
  %1043 = vmatpush1.msra.mxu0 %v175
  %1044 = vmatprep.subr.mxu0 0.0
  %1045 = vmatpush1.msra.mxu0 %v176
  %1046 = vmatprep.subr.mxu0 0.0
  %1047 = vmatpush1.msra.mxu0 %v177
  %1048 = vmatprep.subr.mxu0 0.0
  %1049 = vmatpush1.msra.mxu0 %v178
  %1050 = vmatprep.subr.mxu0 0.0
  %1051 = vmatpush1.msra.mxu0 %v179
  %1052 = vmatprep.subr.mxu0 0.0
  %1053 = vmatpush1.msra.mxu0 %v180
  %1054 = vmatprep.subr.mxu0 0.0
  %1055 = vmatpush1.msra.mxu0 %v181
  %1056 = vmatprep.subr.mxu0 0.0
  %1057 = vmatpush1.msra.mxu0 %v182
  %1058 = vmatprep.mubr.f32.mxu0 %v88
  %1059 = vmatmul.mubr.f32.gmra.mrb[0].mxu0 %v87
  %v1060 = vpop.f32.mrb[0].mxu0
  %v1061 = vadd.f32 0.0, %v1060
  %v1062 = vpop.f32.mrb[0].mxu0
  %1063 = vmatprep.mubr.f32.mxu0 %v90
  %1064 = vmatmul.mubr.f32.gmra.mrb[0].mxu0 %v89
  %v1065 = vpop.f32.mrb[0].mxu0
  %v1066 = vadd.f32 0.0, %v1065
  %v1067 = vpop.f32.mrb[0].mxu0
  %1068 = vmatprep.mubr.f32.mxu0 %v92
  %1069 = vmatmul.mubr.f32.gmra.mrb[0].mxu0 %v91
  %v1070 = vpop.f32.mrb[0].mxu0
  %v1071 = vadd.f32 0.0, %v1070
  %v1072 = vpop.f32.mrb[0].mxu0
  %1073 = vmatprep.mubr.f32.mxu0 %v94
  %1074 = vmatmul.mubr.f32.gmra.mrb[0].mxu0 %v93
  %v1075 = vpop.f32.mrb[0].mxu0
  %v1076 = vadd.f32 0.0, %v1075
  %v1077 = vpop.f32.mrb[0].mxu0
  %1078 = vmatprep.mubr.f32.mxu0 %v96
  %1079 = vmatmul.mubr.f32.gmra.mrb[0].mxu0 %v95
  %v1080 = vpop.f32.mrb[0].mxu0
  %v1081 = vadd.f32 0.0, %v1080
  %v1082 = vpop.f32.mrb[0].mxu0
  %1083 = vmatprep.mubr.f32.mxu0 %v98
  %1084 = vmatmul.mubr.f32.gmra.mrb[0].mxu0 %v97
  %v1085 = vpop.f32.mrb[0].mxu0
  %v1086 = vadd.f32 0.0, %v1085
  %v1087 = vpop.f32.mrb[0].mxu0
  %1088 = vmatprep.mubr.f32.mxu0 %v100
  %1089 = vmatmul.mubr.f32.gmra.mrb[0].mxu0 %v99
  %v1090 = vpop.f32.mrb[0].mxu0
  %v1091 = vadd.f32 0.0, %v1090
  %v1092 = vpop.f32.mrb[0].mxu0
  %1093 = vmatprep.mubr.f32.mxu0 %v102
  %1094 = vmatmul.mubr.f32.gmra.mrb[0].mxu0 %v101
  %v1095 = vpop.f32.mrb[0].mxu0
  %v1096 = vadd.f32 0.0, %v1095
  %v1097 = vpop.f32.mrb[0].mxu0
  %1098 = vmatprep.mubr.f32.mxu0 %v104
  %1099 = vmatmul.mubr.f32.gmra.mrb[0].mxu0 %v103
  %v1100 = vpop.f32.mrb[0].mxu0
  %v1101 = vadd.f32 0.0, %v1100
  %v1102 = vpop.f32.mrb[0].mxu0
  %1103 = vmatprep.mubr.f32.mxu0 %v106
  %1104 = vmatmul.mubr.f32.gmra.mrb[0].mxu0 %v105
  %v1105 = vpop.f32.mrb[0].mxu0
  %v1106 = vadd.f32 0.0, %v1105
  %v1107 = vpop.f32.mrb[0].mxu0
  %1108 = vmatprep.mubr.f32.mxu0 %v108
  %1109 = vmatmul.mubr.f32.gmra.mrb[0].mxu0 %v107
  %v1110 = vpop.f32.mrb[0].mxu0
  %v1111 = vadd.f32 0.0, %v1110
  %v1112 = vpop.f32.mrb[0].mxu0
  %1113 = vmatprep.mubr.f32.mxu0 %v110
  %1114 = vmatmul.mubr.f32.gmra.mrb[0].mxu0 %v109
  %v1115 = vpop.f32.mrb[0].mxu0
  %v1116 = vadd.f32 0.0, %v1115
  %v1117 = vpop.f32.mrb[0].mxu0
  %1118 = vmatprep.mubr.f32.mxu0 %v112
  %1119 = vmatmul.mubr.f32.gmra.mrb[0].mxu0 %v111
  %v1120 = vpop.f32.mrb[0].mxu0
  %v1121 = vadd.f32 0.0, %v1120
  %v1122 = vpop.f32.mrb[0].mxu0
  %1123 = vmatprep.mubr.f32.mxu0 %v114
  %1124 = vmatmul.mubr.f32.gmra.mrb[0].mxu0 %v113
  %v1125 = vpop.f32.mrb[0].mxu0
  %v1126 = vadd.f32 0.0, %v1125
  %v1127 = vpop.f32.mrb[0].mxu0
  %1128 = vmatprep.mubr.f32.mxu0 %v116
  %1129 = vmatmul.mubr.f32.gmra.mrb[0].mxu0 %v115
  %v1130 = vpop.f32.mrb[0].mxu0
  %v1131 = vadd.f32 0.0, %v1130
  %v1132 = vpop.f32.mrb[0].mxu0
  %1133 = vmatprep.mubr.f32.mxu0 %v118
  %1134 = vmatmul.mubr.f32.gmra.mrb[0].mxu0 %v117
  %v1135 = vpop.f32.mrb[0].mxu0
  %v1136 = vadd.f32 0.0, %v1135
  %v1137 = vpop.f32.mrb[0].mxu0
  %1138 = vmatprep.mubr.f32.mxu0 %v120
  %1139 = vmatmul.mubr.f32.gmra.mrb[0].mxu0 %v119
  %v1140 = vpop.f32.mrb[0].mxu0
  %v1141 = vadd.f32 0.0, %v1140
  %v1142 = vpop.f32.mrb[0].mxu0
  %1143 = vmatprep.mubr.f32.mxu0 %v122
  %1144 = vmatmul.mubr.f32.gmra.mrb[0].mxu0 %v121
  %v1145 = vpop.f32.mrb[0].mxu0
  %v1146 = vadd.f32 0.0, %v1145
  %v1147 = vpop.f32.mrb[0].mxu0
  %1148 = vmatprep.mubr.f32.mxu0 %v124
  %1149 = vmatmul.mubr.f32.gmra.mrb[0].mxu0 %v123
  %v1150 = vpop.f32.mrb[0].mxu0
  %v1151 = vadd.f32 0.0, %v1150
  %v1152 = vpop.f32.mrb[0].mxu0
  %1153 = vmatprep.mubr.f32.mxu0 %v126
  %1154 = vmatmul.mubr.f32.gmra.mrb[0].mxu0 %v125
  %v1155 = vpop.f32.mrb[0].mxu0
  %v1156 = vadd.f32 0.0, %v1155
  %v1157 = vpop.f32.mrb[0].mxu0
  %1158 = vmatprep.mubr.f32.mxu0 %v128
  %1159 = vmatmul.mubr.f32.gmra.mrb[0].mxu0 %v127
  %v1160 = vpop.f32.mrb[0].mxu0
  %v1161 = vadd.f32 0.0, %v1160
  %v1162 = vpop.f32.mrb[0].mxu0
  %1163 = vmatprep.mubr.f32.mxu0 %v130
  %1164 = vmatmul.mubr.f32.gmra.mrb[0].mxu0 %v129
  %v1165 = vpop.f32.mrb[0].mxu0
  %v1166 = vadd.f32 0.0, %v1165
  %v1167 = vpop.f32.mrb[0].mxu0
  %1168 = vmatprep.mubr.f32.mxu0 %v132
  %1169 = vmatmul.mubr.f32.gmra.mrb[0].mxu0 %v131
  %v1170 = vpop.f32.mrb[0].mxu0
  %v1171 = vadd.f32 0.0, %v1170
  %v1172 = vpop.f32.mrb[0].mxu0
  %1173 = vmatprep.mubr.f32.mxu0 %v134
  %1174 = vmatmul.mubr.f32.gmra.mrb[0].mxu0 %v133
  %v1175 = vpop.f32.mrb[0].mxu0
  %v1176 = vadd.f32 0.0, %v1175
  %v1177 = vpop.f32.mrb[0].mxu0
  %1178 = vmatprep.mubr.f32.mxu0 %v136
  %1179 = vmatmul.mubr.f32.gmra.mrb[0].mxu0 %v135
  %v1180 = vpop.f32.mrb[0].mxu0
  %v1181 = vadd.f32 0.0, %v1180
  %v1182 = vpop.f32.mrb[0].mxu0
  %1183 = vmatprep.mubr.f32.mxu0 %v138
  %1184 = vmatmul.mubr.f32.gmra.mrb[0].mxu0 %v137
  %v1185 = vpop.f32.mrb[0].mxu0
  %v1186 = vadd.f32 0.0, %v1185
  %v1187 = vpop.f32.mrb[0].mxu0
  %1188 = vmatprep.mubr.f32.mxu0 %v140
  %1189 = vmatmul.mubr.f32.gmra.mrb[0].mxu0 %v139
  %v1190 = vpop.f32.mrb[0].mxu0
  %v1191 = vadd.f32 0.0, %v1190
  %v1192 = vpop.f32.mrb[0].mxu0
  %1193 = vmatprep.mubr.f32.mxu0 %v142
  %1194 = vmatmul.mubr.f32.gmra.mrb[0].mxu0 %v141
  %v1195 = vpop.f32.mrb[0].mxu0
  %v1196 = vadd.f32 0.0, %v1195
  %v1197 = vpop.f32.mrb[0].mxu0
  %1198 = vmatprep.mubr.f32.mxu0 %v144
  %1199 = vmatmul.mubr.f32.gmra.mrb[0].mxu0 %v143
  %v1200 = vpop.f32.mrb[0].mxu0
  %v1201 = vadd.f32 0.0, %v1200
  %v1202 = vpop.f32.mrb[0].mxu0
  %1203 = vmatprep.mubr.f32.mxu0 %v146
  %1204 = vmatmul.mubr.f32.gmra.mrb[0].mxu0 %v145
  %v1205 = vpop.f32.mrb[0].mxu0
  %v1206 = vadd.f32 0.0, %v1205
  %v1207 = vpop.f32.mrb[0].mxu0
  %1208 = vmatprep.mubr.f32.mxu0 %v148
  %1209 = vmatmul.mubr.f32.gmra.mrb[0].mxu0 %v147
  %v1210 = vpop.f32.mrb[0].mxu0
  %v1211 = vadd.f32 0.0, %v1210
  %v1212 = vpop.f32.mrb[0].mxu0
  %1213 = vmatprep.mubr.f32.mxu0 %v150
  %1214 = vmatmul.mubr.f32.gmra.mrb[0].mxu0 %v149
  %v1215 = vpop.f32.mrb[0].mxu0
  %v1216 = vadd.f32 0.0, %v1215
  %v1217 = vpop.f32.mrb[0].mxu0
  %1218 = vdwg.mxu0
  %v1219 = vld [vmem:[%s5] sm:$0xff]
  %v1220 = vld [vmem:[%s5 + $0x8] sm:$0xff]
  %v1221 = vld [vmem:[%s5 + $0x10] sm:$0xff]
  %v1222 = vld [vmem:[%s5 + $0x18] sm:$0xff]
  %v1223 = vld [vmem:[%s5 + $0x20] sm:$0xff]
  %v1224 = vld [vmem:[%s5 + $0x28] sm:$0xff]
  %v1225 = vld [vmem:[%s5 + $0x30] sm:$0xff]
  %v1226 = vld [vmem:[%s5 + $0x38] sm:$0xff]
  %v1227 = vld [vmem:[%s5 + $0x40] sm:$0xff]
  %v1228 = vld [vmem:[%s5 + $0x48] sm:$0xff]
  %v1229 = vld [vmem:[%s5 + $0x50] sm:$0xff]
  %v1230 = vld [vmem:[%s5 + $0x58] sm:$0xff]
  %v1231 = vld [vmem:[%s5 + $0x60] sm:$0xff]
  %v1232 = vld [vmem:[%s5 + $0x68] sm:$0xff]
  %v1233 = vld [vmem:[%s5 + $0x70] sm:$0xff]
  %v1234 = vld [vmem:[%s5 + $0x78] sm:$0xff]
  %v1235 = vld [vmem:[%s5 + $0x80] sm:$0xff]
  %v1236 = vld [vmem:[%s5 + $0x88] sm:$0xff]
  %v1237 = vld [vmem:[%s5 + $0x90] sm:$0xff]
  %v1238 = vld [vmem:[%s5 + $0x98] sm:$0xff]
  %v1239 = vld [vmem:[%s5 + $0xa0] sm:$0xff]
  %v1240 = vld [vmem:[%s5 + $0xa8] sm:$0xff]
  %v1241 = vld [vmem:[%s5 + $0xb0] sm:$0xff]
  %v1242 = vld [vmem:[%s5 + $0xb8] sm:$0xff]
  %v1243 = vld [vmem:[%s5 + $0xc0] sm:$0xff]
  %v1244 = vld [vmem:[%s5 + $0xc8] sm:$0xff]
  %v1245 = vld [vmem:[%s5 + $0xd0] sm:$0xff]
  %v1246 = vld [vmem:[%s5 + $0xd8] sm:$0xff]
  %v1247 = vld [vmem:[%s5 + $0xe0] sm:$0xff]
  %v1248 = vld [vmem:[%s5 + $0xe8] sm:$0xff]
  %v1249 = vld [vmem:[%s5 + $0xf0] sm:$0xff]
  %v1250 = vld [vmem:[%s5 + $0xf8] sm:$0xff]
  %v1251 = vmul.f32 %v962, %v1219
  %v1252 = vmul.f32 %v963, %v1220
  %v1253 = vmul.f32 %v964, %v1221
  %v1254 = vmul.f32 %v965, %v1222
  %v1255 = vmul.f32 %v966, %v1223
  %v1256 = vmul.f32 %v967, %v1224
  %v1257 = vmul.f32 %v968, %v1225
  %v1258 = vmul.f32 %v969, %v1226
  %v1259 = vmul.f32 %v970, %v1227
  %v1260 = vmul.f32 %v971, %v1228
  %v1261 = vmul.f32 %v972, %v1229
  %v1262 = vmul.f32 %v973, %v1230
  %v1263 = vmul.f32 %v974, %v1231
  %v1264 = vmul.f32 %v975, %v1232
  %v1265 = vmul.f32 %v976, %v1233
  %v1266 = vmul.f32 %v977, %v1234
  %v1267 = vmul.f32 %v978, %v1235
  %v1268 = vmul.f32 %v979, %v1236
  %v1269 = vmul.f32 %v980, %v1237
  %v1270 = vmul.f32 %v981, %v1238
  %v1271 = vmul.f32 %v982, %v1239
  %v1272 = vmul.f32 %v983, %v1240
  %v1273 = vmul.f32 %v984, %v1241
  %v1274 = vmul.f32 %v985, %v1242
  %v1275 = vmul.f32 %v986, %v1243
  %v1276 = vmul.f32 %v987, %v1244
  %v1277 = vmul.f32 %v988, %v1245
  %v1278 = vmul.f32 %v989, %v1246
  %v1279 = vmul.f32 %v990, %v1247
  %v1280 = vmul.f32 %v991, %v1248
  %v1281 = vmul.f32 %v992, %v1249
  %v1282 = vmul.f32 %v993, %v1250
  %1283 = vxpose.xlu0.b32.start [1/16] %v1251, 128
  %1284 = vxpose.xlu0.b32.cont [2/16] %v1252, 128
  %1285 = vxpose.xlu0.b32.cont [3/16] %v1253, 128
  %1286 = vxpose.xlu0.b32.cont [4/16] %v1254, 128
  %1287 = vxpose.xlu0.b32.cont [5/16] %v1255, 128
  %1288 = vxpose.xlu0.b32.cont [6/16] %v1256, 128
  %1289 = vxpose.xlu0.b32.cont [7/16] %v1257, 128
  %1290 = vxpose.xlu0.b32.cont [8/16] %v1258, 128
  %1291 = vxpose.xlu0.b32.cont [9/16] %v1259, 128
  %1292 = vxpose.xlu0.b32.cont [10/16] %v1260, 128
  %1293 = vxpose.xlu0.b32.cont [11/16] %v1261, 128
  %1294 = vxpose.xlu0.b32.cont [12/16] %v1262, 128
  %1295 = vxpose.xlu0.b32.cont [13/16] %v1263, 128
  %1296 = vxpose.xlu0.b32.cont [14/16] %v1264, 128
  %1297 = vxpose.xlu0.b32.cont [15/16] %v1265, 128
  %1298 = vxpose.xlu0.b32.end [16/16] %v1266, 128
  %v1299 = vpop.trf.xlu0
  %v1300 = vpop.trf.xlu0
  %v1301 = vpop.trf.xlu0
  %v1302 = vpop.trf.xlu0
  %v1303 = vpop.trf.xlu0
  %v1304 = vpop.trf.xlu0
  %v1305 = vpop.trf.xlu0
  %v1306 = vpop.trf.xlu0
  %v1307 = vpop.trf.xlu0
  %v1308 = vpop.trf.xlu0
  %v1309 = vpop.trf.xlu0
  %v1310 = vpop.trf.xlu0
  %v1311 = vpop.trf.xlu0
  %v1312 = vpop.trf.xlu0
  %v1313 = vpop.trf.xlu0
  %v1314 = vpop.trf.xlu0
  %1315 = vxpose.xlu0.b32.start [1/16] %v1267, 128
  %1316 = vxpose.xlu0.b32.cont [2/16] %v1268, 128
  %1317 = vxpose.xlu0.b32.cont [3/16] %v1269, 128
  %1318 = vxpose.xlu0.b32.cont [4/16] %v1270, 128
  %1319 = vxpose.xlu0.b32.cont [5/16] %v1271, 128
  %1320 = vxpose.xlu0.b32.cont [6/16] %v1272, 128
  %1321 = vxpose.xlu0.b32.cont [7/16] %v1273, 128
  %1322 = vxpose.xlu0.b32.cont [8/16] %v1274, 128
  %1323 = vxpose.xlu0.b32.cont [9/16] %v1275, 128
  %1324 = vxpose.xlu0.b32.cont [10/16] %v1276, 128
  %1325 = vxpose.xlu0.b32.cont [11/16] %v1277, 128
  %1326 = vxpose.xlu0.b32.cont [12/16] %v1278, 128
  %1327 = vxpose.xlu0.b32.cont [13/16] %v1279, 128
  %1328 = vxpose.xlu0.b32.cont [14/16] %v1280, 128
  %1329 = vxpose.xlu0.b32.cont [15/16] %v1281, 128
  %1330 = vxpose.xlu0.b32.end [16/16] %v1282, 128
  %v1331 = vpop.trf.xlu0
  %v1332 = vpop.trf.xlu0
  %v1333 = vpop.trf.xlu0
  %v1334 = vpop.trf.xlu0
  %v1335 = vpop.trf.xlu0
  %v1336 = vpop.trf.xlu0
  %v1337 = vpop.trf.xlu0
  %v1338 = vpop.trf.xlu0
  %v1339 = vpop.trf.xlu0
  %v1340 = vpop.trf.xlu0
  %v1341 = vpop.trf.xlu0
  %v1342 = vpop.trf.xlu0
  %v1343 = vpop.trf.xlu0
  %v1344 = vpop.trf.xlu0
  %v1345 = vpop.trf.xlu0
  %v1346 = vpop.trf.xlu0
  %1347 = vmatprep.subr.mxu0 0.0
  %1348 = vmatpush1.msra.mxu0 %v151
  %1349 = vmatprep.subr.mxu0 0.0
  %1350 = vmatpush1.msra.mxu0 %v152
  %1351 = vmatprep.subr.mxu0 0.0
  %1352 = vmatpush1.msra.mxu0 %v153
  %1353 = vmatprep.subr.mxu0 0.0
  %1354 = vmatpush1.msra.mxu0 %v154
  %1355 = vmatprep.subr.mxu0 0.0
  %1356 = vmatpush1.msra.mxu0 %v155
  %1357 = vmatprep.subr.mxu0 0.0
  %1358 = vmatpush1.msra.mxu0 %v156
  %1359 = vmatprep.subr.mxu0 0.0
  %1360 = vmatpush1.msra.mxu0 %v157
  %1361 = vmatprep.subr.mxu0 0.0
  %1362 = vmatpush1.msra.mxu0 %v158
  %1363 = vmatprep.subr.mxu0 0.0
  %1364 = vmatpush1.msra.mxu0 %v159
  %1365 = vmatprep.subr.mxu0 0.0
  %1366 = vmatpush1.msra.mxu0 %v160
  %1367 = vmatprep.subr.mxu0 0.0
  %1368 = vmatpush1.msra.mxu0 %v161
  %1369 = vmatprep.subr.mxu0 0.0
  %1370 = vmatpush1.msra.mxu0 %v162
  %1371 = vmatprep.subr.mxu0 0.0
  %1372 = vmatpush1.msra.mxu0 %v163
  %1373 = vmatprep.subr.mxu0 0.0
  %1374 = vmatpush1.msra.mxu0 %v164
  %1375 = vmatprep.subr.mxu0 0.0
  %1376 = vmatpush1.msra.mxu0 %v165
  %1377 = vmatprep.subr.mxu0 0.0
  %1378 = vmatpush1.msra.mxu0 %v166
  %1379 = vmatprep.subr.mxu0 0.0
  %1380 = vmatpush1.msra.mxu0 %v167
  %1381 = vmatprep.subr.mxu0 0.0
  %1382 = vmatpush1.msra.mxu0 %v168
  %1383 = vmatprep.subr.mxu0 0.0
  %1384 = vmatpush1.msra.mxu0 %v169
  %1385 = vmatprep.subr.mxu0 0.0
  %1386 = vmatpush1.msra.mxu0 %v170
  %1387 = vmatprep.subr.mxu0 0.0
  %1388 = vmatpush1.msra.mxu0 %v171
  %1389 = vmatprep.subr.mxu0 0.0
  %1390 = vmatpush1.msra.mxu0 %v172
  %1391 = vmatprep.subr.mxu0 0.0
  %1392 = vmatpush1.msra.mxu0 %v173
  %1393 = vmatprep.subr.mxu0 0.0
  %1394 = vmatpush1.msra.mxu0 %v174
  %1395 = vmatprep.subr.mxu0 0.0
  %1396 = vmatpush1.msra.mxu0 %v175
  %1397 = vmatprep.subr.mxu0 0.0
  %1398 = vmatpush1.msra.mxu0 %v176
  %1399 = vmatprep.subr.mxu0 0.0
  %1400 = vmatpush1.msra.mxu0 %v177
  %1401 = vmatprep.subr.mxu0 0.0
  %1402 = vmatpush1.msra.mxu0 %v178
  %1403 = vmatprep.subr.mxu0 0.0
  %1404 = vmatpush1.msra.mxu0 %v179
  %1405 = vmatprep.subr.mxu0 0.0
  %1406 = vmatpush1.msra.mxu0 %v180
  %1407 = vmatprep.subr.mxu0 0.0
  %1408 = vmatpush1.msra.mxu0 %v181
  %1409 = vmatprep.subr.mxu0 0.0
  %1410 = vmatpush1.msra.mxu0 %v182
  %1411 = vmatprep.mubr.f32.mxu0 %v1331
  %1412 = vmatmul.mubr.f32.gmra.mrb[0].mxu0 %v1299
  %v1413 = vpop.f32.mrb[0].mxu0
  %v1414 = vadd.f32 0.0, %v1413
  %v1415 = vpop.f32.mrb[0].mxu0
  %1416 = vmatprep.mubr.f32.mxu0 %v1332
  %1417 = vmatmul.mubr.f32.gmra.mrb[0].mxu0 %v1300
  %v1418 = vpop.f32.mrb[0].mxu0
  %v1419 = vadd.f32 0.0, %v1418
  %v1420 = vpop.f32.mrb[0].mxu0
  %1421 = vmatprep.mubr.f32.mxu0 %v1333
  %1422 = vmatmul.mubr.f32.gmra.mrb[0].mxu0 %v1301
  %v1423 = vpop.f32.mrb[0].mxu0
  %v1424 = vadd.f32 0.0, %v1423
  %v1425 = vpop.f32.mrb[0].mxu0
  %1426 = vmatprep.mubr.f32.mxu0 %v1334
  %1427 = vmatmul.mubr.f32.gmra.mrb[0].mxu0 %v1302
  %v1428 = vpop.f32.mrb[0].mxu0
  %v1429 = vadd.f32 0.0, %v1428
  %v1430 = vpop.f32.mrb[0].mxu0
  %1431 = vmatprep.mubr.f32.mxu0 %v1335
  %1432 = vmatmul.mubr.f32.gmra.mrb[0].mxu0 %v1303
  %v1433 = vpop.f32.mrb[0].mxu0
  %v1434 = vadd.f32 0.0, %v1433
  %v1435 = vpop.f32.mrb[0].mxu0
  %1436 = vmatprep.mubr.f32.mxu0 %v1336
  %1437 = vmatmul.mubr.f32.gmra.mrb[0].mxu0 %v1304
  %v1438 = vpop.f32.mrb[0].mxu0
  %v1439 = vadd.f32 0.0, %v1438
  %v1440 = vpop.f32.mrb[0].mxu0
  %1441 = vmatprep.mubr.f32.mxu0 %v1337
  %1442 = vmatmul.mubr.f32.gmra.mrb[0].mxu0 %v1305
  %v1443 = vpop.f32.mrb[0].mxu0
  %v1444 = vadd.f32 0.0, %v1443
  %v1445 = vpop.f32.mrb[0].mxu0
  %1446 = vmatprep.mubr.f32.mxu0 %v1338
  %1447 = vmatmul.mubr.f32.gmra.mrb[0].mxu0 %v1306
  %v1448 = vpop.f32.mrb[0].mxu0
  %v1449 = vadd.f32 0.0, %v1448
  %v1450 = vpop.f32.mrb[0].mxu0
  %1451 = vdwg.mxu0
  %vm1452 = vcmask 523264
  %v1454 = vsel %vm1452, %v1251, 0
  %v1457 = vsel %vm1452, %v1252, 0
  %v1460 = vsel %vm1452, %v1253, 0
  %v1463 = vsel %vm1452, %v1254, 0
  %v1466 = vsel %vm1452, %v1255, 0
  %v1469 = vsel %vm1452, %v1256, 0
  %v1472 = vsel %vm1452, %v1257, 0
  %v1475 = vsel %vm1452, %v1258, 0
  %v1478 = vsel %vm1452, %v1259, 0
  %v1481 = vsel %vm1452, %v1260, 0
  %v1484 = vsel %vm1452, %v1261, 0
  %v1487 = vsel %vm1452, %v1262, 0
  %v1490 = vsel %vm1452, %v1263, 0
  %v1493 = vsel %vm1452, %v1264, 0
  %v1496 = vsel %vm1452, %v1265, 0
  %v1499 = vsel %vm1452, %v1266, 0
  %v1502 = vsel %vm1452, %v1267, 0
  %v1505 = vsel %vm1452, %v1268, 0
  %v1508 = vsel %vm1452, %v1269, 0
  %v1511 = vsel %vm1452, %v1270, 0
  %v1514 = vsel %vm1452, %v1271, 0
  %v1517 = vsel %vm1452, %v1272, 0
  %v1520 = vsel %vm1452, %v1273, 0
  %v1523 = vsel %vm1452, %v1274, 0
  %v1526 = vsel %vm1452, %v1275, 0
  %v1529 = vsel %vm1452, %v1276, 0
  %v1532 = vsel %vm1452, %v1277, 0
  %v1535 = vsel %vm1452, %v1278, 0
  %v1538 = vsel %vm1452, %v1279, 0
  %v1541 = vsel %vm1452, %v1280, 0
  %v1544 = vsel %vm1452, %v1281, 0
  %v1547 = vsel %vm1452, %v1282, 0
  %1549 = vmatprep.subr.mxu0 0.0
  %1550 = vmatpush1.msra.mxu0 %v1414
  %1551 = vmatprep.subr.mxu0 0.0
  %1552 = vmatpush1.msra.mxu0 %v1419
  %1553 = vmatprep.subr.mxu0 0.0
  %1554 = vmatpush1.msra.mxu0 %v1424
  %1555 = vmatprep.subr.mxu0 0.0
  %1556 = vmatpush1.msra.mxu0 %v1429
  %1557 = vmatprep.subr.mxu0 0.0
  %1558 = vmatpush1.msra.mxu0 %v1434
  %1559 = vmatprep.subr.mxu0 0.0
  %1560 = vmatpush1.msra.mxu0 %v1439
  %1561 = vmatprep.subr.mxu0 0.0
  %1562 = vmatpush1.msra.mxu0 %v1444
  %1563 = vmatprep.subr.mxu0 0.0
  %1564 = vmatpush1.msra.mxu0 %v1449
  %1565 = vmatprep.subr.mxu0 0.0
  %1566 = vmatpush1.msra.mxu0 0.0
  %1567 = vmatprep.subr.mxu0 0.0
  %1568 = vmatpush1.msra.mxu0 0.0
  %1569 = vmatprep.subr.mxu0 0.0
  %1570 = vmatpush1.msra.mxu0 0.0
  %1571 = vmatprep.subr.mxu0 0.0
  %1572 = vmatpush1.msra.mxu0 0.0
  %1573 = vmatprep.subr.mxu0 0.0
  %1574 = vmatpush1.msra.mxu0 0.0
  %1575 = vmatprep.subr.mxu0 0.0
  %1576 = vmatpush1.msra.mxu0 0.0
  %1577 = vmatprep.subr.mxu0 0.0
  %1578 = vmatpush1.msra.mxu0 0.0
  %1579 = vmatprep.subr.mxu0 0.0
  %1580 = vmatpush1.msra.mxu0 0.0
  %1581 = vmatprep.subr.mxu0 0.0
  %1582 = vmatpush1.msra.mxu0 0.0
  %1583 = vmatprep.subr.mxu0 0.0
  %1584 = vmatpush1.msra.mxu0 0.0
  %1585 = vmatprep.subr.mxu0 0.0
  %1586 = vmatpush1.msra.mxu0 0.0
  %1587 = vmatprep.subr.mxu0 0.0
  %1588 = vmatpush1.msra.mxu0 0.0
  %1589 = vmatprep.subr.mxu0 0.0
  %1590 = vmatpush1.msra.mxu0 0.0
  %1591 = vmatprep.subr.mxu0 0.0
  %1592 = vmatpush1.msra.mxu0 0.0
  %1593 = vmatprep.subr.mxu0 0.0
  %1594 = vmatpush1.msra.mxu0 0.0
  %1595 = vmatprep.subr.mxu0 0.0
  %1596 = vmatpush1.msra.mxu0 0.0
  %1597 = vmatprep.subr.mxu0 0.0
  %1598 = vmatpush1.msra.mxu0 0.0
  %1599 = vmatprep.subr.mxu0 0.0
  %1600 = vmatpush1.msra.mxu0 0.0
  %1601 = vmatprep.subr.mxu0 0.0
  %1602 = vmatpush1.msra.mxu0 0.0
  %1603 = vmatprep.subr.mxu0 0.0
  %1604 = vmatpush1.msra.mxu0 0.0
  %1605 = vmatprep.subr.mxu0 0.0
  %1606 = vmatpush1.msra.mxu0 0.0
  %1607 = vmatprep.subr.mxu0 0.0
  %1608 = vmatpush1.msra.mxu0 0.0
  %1609 = vmatprep.subr.mxu0 0.0
  %1610 = vmatpush1.msra.mxu0 0.0
  %1611 = vmatprep.subr.mxu0 0.0
  %1612 = vmatpush1.msra.mxu0 0.0
  %1613 = vmatprep.mubr.f32.mxu0 0.0
  %1614 = vmatmul.mubr.f32.gmra.mrb[0].mxu0 %v1454
  %v1615 = vpop.f32.mrb[0].mxu0
  %v1616 = vadd.f32 0.0, %v1615
  %v1617 = vpop.f32.mrb[0].mxu0
  %1618 = vmatprep.mubr.f32.mxu0 0.0
  %1619 = vmatmul.mubr.f32.gmra.mrb[0].mxu0 %v1457
  %v1620 = vpop.f32.mrb[0].mxu0
  %v1621 = vadd.f32 0.0, %v1620
  %v1622 = vpop.f32.mrb[0].mxu0
  %1623 = vmatprep.mubr.f32.mxu0 0.0
  %1624 = vmatmul.mubr.f32.gmra.mrb[0].mxu0 %v1460
  %v1625 = vpop.f32.mrb[0].mxu0
  %v1626 = vadd.f32 0.0, %v1625
  %v1627 = vpop.f32.mrb[0].mxu0
  %1628 = vmatprep.mubr.f32.mxu0 0.0
  %1629 = vmatmul.mubr.f32.gmra.mrb[0].mxu0 %v1463
  %v1630 = vpop.f32.mrb[0].mxu0
  %v1631 = vadd.f32 0.0, %v1630
  %v1632 = vpop.f32.mrb[0].mxu0
  %1633 = vmatprep.mubr.f32.mxu0 0.0
  %1634 = vmatmul.mubr.f32.gmra.mrb[0].mxu0 %v1466
  %v1635 = vpop.f32.mrb[0].mxu0
  %v1636 = vadd.f32 0.0, %v1635
  %v1637 = vpop.f32.mrb[0].mxu0
  %1638 = vmatprep.mubr.f32.mxu0 0.0
  %1639 = vmatmul.mubr.f32.gmra.mrb[0].mxu0 %v1469
  %v1640 = vpop.f32.mrb[0].mxu0
  %v1641 = vadd.f32 0.0, %v1640
  %v1642 = vpop.f32.mrb[0].mxu0
  %1643 = vmatprep.mubr.f32.mxu0 0.0
  %1644 = vmatmul.mubr.f32.gmra.mrb[0].mxu0 %v1472
  %v1645 = vpop.f32.mrb[0].mxu0
  %v1646 = vadd.f32 0.0, %v1645
  %v1647 = vpop.f32.mrb[0].mxu0
  %1648 = vmatprep.mubr.f32.mxu0 0.0
  %1649 = vmatmul.mubr.f32.gmra.mrb[0].mxu0 %v1475
  %v1650 = vpop.f32.mrb[0].mxu0
  %v1651 = vadd.f32 0.0, %v1650
  %v1652 = vpop.f32.mrb[0].mxu0
  %1653 = vmatprep.mubr.f32.mxu0 0.0
  %1654 = vmatmul.mubr.f32.gmra.mrb[0].mxu0 %v1478
  %v1655 = vpop.f32.mrb[0].mxu0
  %v1656 = vadd.f32 0.0, %v1655
  %v1657 = vpop.f32.mrb[0].mxu0
  %1658 = vmatprep.mubr.f32.mxu0 0.0
  %1659 = vmatmul.mubr.f32.gmra.mrb[0].mxu0 %v1481
  %v1660 = vpop.f32.mrb[0].mxu0
  %v1661 = vadd.f32 0.0, %v1660
  %v1662 = vpop.f32.mrb[0].mxu0
  %1663 = vmatprep.mubr.f32.mxu0 0.0
  %1664 = vmatmul.mubr.f32.gmra.mrb[0].mxu0 %v1484
  %v1665 = vpop.f32.mrb[0].mxu0
  %v1666 = vadd.f32 0.0, %v1665
  %v1667 = vpop.f32.mrb[0].mxu0
  %1668 = vmatprep.mubr.f32.mxu0 0.0
  %1669 = vmatmul.mubr.f32.gmra.mrb[0].mxu0 %v1487
  %v1670 = vpop.f32.mrb[0].mxu0
  %v1671 = vadd.f32 0.0, %v1670
  %v1672 = vpop.f32.mrb[0].mxu0
  %1673 = vmatprep.mubr.f32.mxu0 0.0
  %1674 = vmatmul.mubr.f32.gmra.mrb[0].mxu0 %v1490
  %v1675 = vpop.f32.mrb[0].mxu0
  %v1676 = vadd.f32 0.0, %v1675
  %v1677 = vpop.f32.mrb[0].mxu0
  %1678 = vmatprep.mubr.f32.mxu0 0.0
  %1679 = vmatmul.mubr.f32.gmra.mrb[0].mxu0 %v1493
  %v1680 = vpop.f32.mrb[0].mxu0
  %v1681 = vadd.f32 0.0, %v1680
  %v1682 = vpop.f32.mrb[0].mxu0
  %1683 = vmatprep.mubr.f32.mxu0 0.0
  %1684 = vmatmul.mubr.f32.gmra.mrb[0].mxu0 %v1496
  %v1685 = vpop.f32.mrb[0].mxu0
  %v1686 = vadd.f32 0.0, %v1685
  %v1687 = vpop.f32.mrb[0].mxu0
  %1688 = vmatprep.mubr.f32.mxu0 0.0
  %1689 = vmatmul.mubr.f32.gmra.mrb[0].mxu0 %v1499
  %v1690 = vpop.f32.mrb[0].mxu0
  %v1691 = vadd.f32 0.0, %v1690
  %v1692 = vpop.f32.mrb[0].mxu0
  %1693 = vmatprep.mubr.f32.mxu0 0.0
  %1694 = vmatmul.mubr.f32.gmra.mrb[0].mxu0 %v1502
  %v1695 = vpop.f32.mrb[0].mxu0
  %v1696 = vadd.f32 0.0, %v1695
  %v1697 = vpop.f32.mrb[0].mxu0
  %1698 = vmatprep.mubr.f32.mxu0 0.0
  %1699 = vmatmul.mubr.f32.gmra.mrb[0].mxu0 %v1505
  %v1700 = vpop.f32.mrb[0].mxu0
  %v1701 = vadd.f32 0.0, %v1700
  %v1702 = vpop.f32.mrb[0].mxu0
  %1703 = vmatprep.mubr.f32.mxu0 0.0
  %1704 = vmatmul.mubr.f32.gmra.mrb[0].mxu0 %v1508
  %v1705 = vpop.f32.mrb[0].mxu0
  %v1706 = vadd.f32 0.0, %v1705
  %v1707 = vpop.f32.mrb[0].mxu0
  %1708 = vmatprep.mubr.f32.mxu0 0.0
  %1709 = vmatmul.mubr.f32.gmra.mrb[0].mxu0 %v1511
  %v1710 = vpop.f32.mrb[0].mxu0
  %v1711 = vadd.f32 0.0, %v1710
  %v1712 = vpop.f32.mrb[0].mxu0
  %1713 = vmatprep.mubr.f32.mxu0 0.0
  %1714 = vmatmul.mubr.f32.gmra.mrb[0].mxu0 %v1514
  %v1715 = vpop.f32.mrb[0].mxu0
  %v1716 = vadd.f32 0.0, %v1715
  %v1717 = vpop.f32.mrb[0].mxu0
  %1718 = vmatprep.mubr.f32.mxu0 0.0
  %1719 = vmatmul.mubr.f32.gmra.mrb[0].mxu0 %v1517
  %v1720 = vpop.f32.mrb[0].mxu0
  %v1721 = vadd.f32 0.0, %v1720
  %v1722 = vpop.f32.mrb[0].mxu0
  %1723 = vmatprep.mubr.f32.mxu0 0.0
  %1724 = vmatmul.mubr.f32.gmra.mrb[0].mxu0 %v1520
  %v1725 = vpop.f32.mrb[0].mxu0
  %v1726 = vadd.f32 0.0, %v1725
  %v1727 = vpop.f32.mrb[0].mxu0
  %1728 = vmatprep.mubr.f32.mxu0 0.0
  %1729 = vmatmul.mubr.f32.gmra.mrb[0].mxu0 %v1523
  %v1730 = vpop.f32.mrb[0].mxu0
  %v1731 = vadd.f32 0.0, %v1730
  %v1732 = vpop.f32.mrb[0].mxu0
  %1733 = vmatprep.mubr.f32.mxu0 0.0
  %1734 = vmatmul.mubr.f32.gmra.mrb[0].mxu0 %v1526
  %v1735 = vpop.f32.mrb[0].mxu0
  %v1736 = vadd.f32 0.0, %v1735
  %v1737 = vpop.f32.mrb[0].mxu0
  %1738 = vmatprep.mubr.f32.mxu0 0.0
  %1739 = vmatmul.mubr.f32.gmra.mrb[0].mxu0 %v1529
  %v1740 = vpop.f32.mrb[0].mxu0
  %v1741 = vadd.f32 0.0, %v1740
  %v1742 = vpop.f32.mrb[0].mxu0
  %1743 = vmatprep.mubr.f32.mxu0 0.0
  %1744 = vmatmul.mubr.f32.gmra.mrb[0].mxu0 %v1532
  %v1745 = vpop.f32.mrb[0].mxu0
  %v1746 = vadd.f32 0.0, %v1745
  %v1747 = vpop.f32.mrb[0].mxu0
  %1748 = vmatprep.mubr.f32.mxu0 0.0
  %1749 = vmatmul.mubr.f32.gmra.mrb[0].mxu0 %v1535
  %v1750 = vpop.f32.mrb[0].mxu0
  %v1751 = vadd.f32 0.0, %v1750
  %v1752 = vpop.f32.mrb[0].mxu0
  %1753 = vmatprep.mubr.f32.mxu0 0.0
  %1754 = vmatmul.mubr.f32.gmra.mrb[0].mxu0 %v1538
  %v1755 = vpop.f32.mrb[0].mxu0
  %v1756 = vadd.f32 0.0, %v1755
  %v1757 = vpop.f32.mrb[0].mxu0
  %1758 = vmatprep.mubr.f32.mxu0 0.0
  %1759 = vmatmul.mubr.f32.gmra.mrb[0].mxu0 %v1541
  %v1760 = vpop.f32.mrb[0].mxu0
  %v1761 = vadd.f32 0.0, %v1760
  %v1762 = vpop.f32.mrb[0].mxu0
  %1763 = vmatprep.mubr.f32.mxu0 0.0
  %1764 = vmatmul.mubr.f32.gmra.mrb[0].mxu0 %v1544
  %v1765 = vpop.f32.mrb[0].mxu0
  %v1766 = vadd.f32 0.0, %v1765
  %v1767 = vpop.f32.mrb[0].mxu0
  %1768 = vmatprep.mubr.f32.mxu0 0.0
  %1769 = vmatmul.mubr.f32.gmra.mrb[0].mxu0 %v1547
  %v1770 = vpop.f32.mrb[0].mxu0
  %v1771 = vadd.f32 0.0, %v1770
  %v1772 = vpop.f32.mrb[0].mxu0
  %1773 = vdwg.mxu0
  %v1774 = vadd.f32 %v1061, %v1616
  %v1775 = vadd.f32 %v1066, %v1621
  %v1776 = vadd.f32 %v1071, %v1626
  %v1777 = vadd.f32 %v1076, %v1631
  %v1778 = vadd.f32 %v1081, %v1636
  %v1779 = vadd.f32 %v1086, %v1641
  %v1780 = vadd.f32 %v1091, %v1646
  %v1781 = vadd.f32 %v1096, %v1651
  %v1782 = vadd.f32 %v1101, %v1656
  %v1783 = vadd.f32 %v1106, %v1661
  %v1784 = vadd.f32 %v1111, %v1666
  %v1785 = vadd.f32 %v1116, %v1671
  %v1786 = vadd.f32 %v1121, %v1676
  %v1787 = vadd.f32 %v1126, %v1681
  %v1788 = vadd.f32 %v1131, %v1686
  %v1789 = vadd.f32 %v1136, %v1691
  %v1790 = vadd.f32 %v1141, %v1696
  %v1791 = vadd.f32 %v1146, %v1701
  %v1792 = vadd.f32 %v1151, %v1706
  %v1793 = vadd.f32 %v1156, %v1711
  %v1794 = vadd.f32 %v1161, %v1716
  %v1795 = vadd.f32 %v1166, %v1721
  %v1796 = vadd.f32 %v1171, %v1726
  %v1797 = vadd.f32 %v1176, %v1731
  %v1798 = vadd.f32 %v1181, %v1736
  %v1799 = vadd.f32 %v1186, %v1741
  %v1800 = vadd.f32 %v1191, %v1746
  %v1801 = vadd.f32 %v1196, %v1751
  %v1802 = vadd.f32 %v1201, %v1756
  %v1803 = vadd.f32 %v1206, %v1761
  %v1804 = vadd.f32 %v1211, %v1766
  %v1805 = vadd.f32 %v1216, %v1771
  %v1806 = vadd.f32 %v151, %v1774
  %v1807 = vadd.f32 %v152, %v1775
  %v1808 = vadd.f32 %v153, %v1776
  %v1809 = vadd.f32 %v154, %v1777
  %v1810 = vadd.f32 %v155, %v1778
  %v1811 = vadd.f32 %v156, %v1779
  %v1812 = vadd.f32 %v157, %v1780
  %v1813 = vadd.f32 %v158, %v1781
  %v1814 = vadd.f32 %v159, %v1782
  %v1815 = vadd.f32 %v160, %v1783
  %v1816 = vadd.f32 %v161, %v1784
  %v1817 = vadd.f32 %v162, %v1785
  %v1818 = vadd.f32 %v163, %v1786
  %v1819 = vadd.f32 %v164, %v1787
  %v1820 = vadd.f32 %v165, %v1788
  %v1821 = vadd.f32 %v166, %v1789
  %v1822 = vadd.f32 %v167, %v1790
  %v1823 = vadd.f32 %v168, %v1791
  %v1824 = vadd.f32 %v169, %v1792
  %v1825 = vadd.f32 %v170, %v1793
  %v1826 = vadd.f32 %v171, %v1794
  %v1827 = vadd.f32 %v172, %v1795
  %v1828 = vadd.f32 %v173, %v1796
  %v1829 = vadd.f32 %v174, %v1797
  %v1830 = vadd.f32 %v175, %v1798
  %v1831 = vadd.f32 %v176, %v1799
  %v1832 = vadd.f32 %v177, %v1800
  %v1833 = vadd.f32 %v178, %v1801
  %v1834 = vadd.f32 %v179, %v1802
  %v1835 = vadd.f32 %v180, %v1803
  %v1836 = vadd.f32 %v181, %v1804
  %v1837 = vadd.f32 %v182, %v1805
  %1838 = vmatprep.subr.mxu0 0.0
  %1839 = vmatpush1.msra.mxu0 %v1774
  %1840 = vmatprep.subr.mxu0 0.0
  %1841 = vmatpush1.msra.mxu0 %v1775
  %1842 = vmatprep.subr.mxu0 0.0
  %1843 = vmatpush1.msra.mxu0 %v1776
  %1844 = vmatprep.subr.mxu0 0.0
  %1845 = vmatpush1.msra.mxu0 %v1777
  %1846 = vmatprep.subr.mxu0 0.0
  %1847 = vmatpush1.msra.mxu0 %v1778
  %1848 = vmatprep.subr.mxu0 0.0
  %1849 = vmatpush1.msra.mxu0 %v1779
  %1850 = vmatprep.subr.mxu0 0.0
  %1851 = vmatpush1.msra.mxu0 %v1780
  %1852 = vmatprep.subr.mxu0 0.0
  %1853 = vmatpush1.msra.mxu0 %v1781
  %1854 = vmatprep.subr.mxu0 0.0
  %1855 = vmatpush1.msra.mxu0 %v1782
  %1856 = vmatprep.subr.mxu0 0.0
  %1857 = vmatpush1.msra.mxu0 %v1783
  %1858 = vmatprep.subr.mxu0 0.0
  %1859 = vmatpush1.msra.mxu0 %v1784
  %1860 = vmatprep.subr.mxu0 0.0
  %1861 = vmatpush1.msra.mxu0 %v1785
  %1862 = vmatprep.subr.mxu0 0.0
  %1863 = vmatpush1.msra.mxu0 %v1786
  %1864 = vmatprep.subr.mxu0 0.0
  %1865 = vmatpush1.msra.mxu0 %v1787
  %1866 = vmatprep.subr.mxu0 0.0
  %1867 = vmatpush1.msra.mxu0 %v1788
  %1868 = vmatprep.subr.mxu0 0.0
  %1869 = vmatpush1.msra.mxu0 %v1789
  %1870 = vmatprep.subr.mxu0 0.0
  %1871 = vmatpush1.msra.mxu0 %v1790
  %1872 = vmatprep.subr.mxu0 0.0
  %1873 = vmatpush1.msra.mxu0 %v1791
  %1874 = vmatprep.subr.mxu0 0.0
  %1875 = vmatpush1.msra.mxu0 %v1792
  %1876 = vmatprep.subr.mxu0 0.0
  %1877 = vmatpush1.msra.mxu0 %v1793
  %1878 = vmatprep.subr.mxu0 0.0
  %1879 = vmatpush1.msra.mxu0 %v1794
  %1880 = vmatprep.subr.mxu0 0.0
  %1881 = vmatpush1.msra.mxu0 %v1795
  %1882 = vmatprep.subr.mxu0 0.0
  %1883 = vmatpush1.msra.mxu0 %v1796
  %1884 = vmatprep.subr.mxu0 0.0
  %1885 = vmatpush1.msra.mxu0 %v1797
  %1886 = vmatprep.subr.mxu0 0.0
  %1887 = vmatpush1.msra.mxu0 %v1798
  %1888 = vmatprep.subr.mxu0 0.0
  %1889 = vmatpush1.msra.mxu0 %v1799
  %1890 = vmatprep.subr.mxu0 0.0
  %1891 = vmatpush1.msra.mxu0 %v1800
  %1892 = vmatprep.subr.mxu0 0.0
  %1893 = vmatpush1.msra.mxu0 %v1801
  %1894 = vmatprep.subr.mxu0 0.0
  %1895 = vmatpush1.msra.mxu0 %v1802
  %1896 = vmatprep.subr.mxu0 0.0
  %1897 = vmatpush1.msra.mxu0 %v1803
  %1898 = vmatprep.subr.mxu0 0.0
  %1899 = vmatpush1.msra.mxu0 %v1804
  %1900 = vmatprep.subr.mxu0 0.0
  %1901 = vmatpush1.msra.mxu0 %v1805
  %1902 = vmatprep.mubr.f32.mxu0 %v88
  %1903 = vmatmul.mubr.f32.gmra.mrb[0].mxu0 %v87
  %v1904 = vpop.f32.mrb[0].mxu0
  %v1905 = vadd.f32 0.0, %v1904
  %v1906 = vpop.f32.mrb[0].mxu0
  %1907 = vmatprep.mubr.f32.mxu0 %v90
  %1908 = vmatmul.mubr.f32.gmra.mrb[0].mxu0 %v89
  %v1909 = vpop.f32.mrb[0].mxu0
  %v1910 = vadd.f32 0.0, %v1909
  %v1911 = vpop.f32.mrb[0].mxu0
  %1912 = vmatprep.mubr.f32.mxu0 %v92
  %1913 = vmatmul.mubr.f32.gmra.mrb[0].mxu0 %v91
  %v1914 = vpop.f32.mrb[0].mxu0
  %v1915 = vadd.f32 0.0, %v1914
  %v1916 = vpop.f32.mrb[0].mxu0
  %1917 = vmatprep.mubr.f32.mxu0 %v94
  %1918 = vmatmul.mubr.f32.gmra.mrb[0].mxu0 %v93
  %v1919 = vpop.f32.mrb[0].mxu0
  %v1920 = vadd.f32 0.0, %v1919
  %v1921 = vpop.f32.mrb[0].mxu0
  %1922 = vmatprep.mubr.f32.mxu0 %v96
  %1923 = vmatmul.mubr.f32.gmra.mrb[0].mxu0 %v95
  %v1924 = vpop.f32.mrb[0].mxu0
  %v1925 = vadd.f32 0.0, %v1924
  %v1926 = vpop.f32.mrb[0].mxu0
  %1927 = vmatprep.mubr.f32.mxu0 %v98
  %1928 = vmatmul.mubr.f32.gmra.mrb[0].mxu0 %v97
  %v1929 = vpop.f32.mrb[0].mxu0
  %v1930 = vadd.f32 0.0, %v1929
  %v1931 = vpop.f32.mrb[0].mxu0
  %1932 = vmatprep.mubr.f32.mxu0 %v100
  %1933 = vmatmul.mubr.f32.gmra.mrb[0].mxu0 %v99
  %v1934 = vpop.f32.mrb[0].mxu0
  %v1935 = vadd.f32 0.0, %v1934
  %v1936 = vpop.f32.mrb[0].mxu0
  %1937 = vmatprep.mubr.f32.mxu0 %v102
  %1938 = vmatmul.mubr.f32.gmra.mrb[0].mxu0 %v101
  %v1939 = vpop.f32.mrb[0].mxu0
  %v1940 = vadd.f32 0.0, %v1939
  %v1941 = vpop.f32.mrb[0].mxu0
  %1942 = vmatprep.mubr.f32.mxu0 %v104
  %1943 = vmatmul.mubr.f32.gmra.mrb[0].mxu0 %v103
  %v1944 = vpop.f32.mrb[0].mxu0
  %v1945 = vadd.f32 0.0, %v1944
  %v1946 = vpop.f32.mrb[0].mxu0
  %1947 = vmatprep.mubr.f32.mxu0 %v106
  %1948 = vmatmul.mubr.f32.gmra.mrb[0].mxu0 %v105
  %v1949 = vpop.f32.mrb[0].mxu0
  %v1950 = vadd.f32 0.0, %v1949
  %v1951 = vpop.f32.mrb[0].mxu0
  %1952 = vmatprep.mubr.f32.mxu0 %v108
  %1953 = vmatmul.mubr.f32.gmra.mrb[0].mxu0 %v107
  %v1954 = vpop.f32.mrb[0].mxu0
  %v1955 = vadd.f32 0.0, %v1954
  %v1956 = vpop.f32.mrb[0].mxu0
  %1957 = vmatprep.mubr.f32.mxu0 %v110
  %1958 = vmatmul.mubr.f32.gmra.mrb[0].mxu0 %v109
  %v1959 = vpop.f32.mrb[0].mxu0
  %v1960 = vadd.f32 0.0, %v1959
  %v1961 = vpop.f32.mrb[0].mxu0
  %1962 = vmatprep.mubr.f32.mxu0 %v112
  %1963 = vmatmul.mubr.f32.gmra.mrb[0].mxu0 %v111
  %v1964 = vpop.f32.mrb[0].mxu0
  %v1965 = vadd.f32 0.0, %v1964
  %v1966 = vpop.f32.mrb[0].mxu0
  %1967 = vmatprep.mubr.f32.mxu0 %v114
  %1968 = vmatmul.mubr.f32.gmra.mrb[0].mxu0 %v113
  %v1969 = vpop.f32.mrb[0].mxu0
  %v1970 = vadd.f32 0.0, %v1969
  %v1971 = vpop.f32.mrb[0].mxu0
  %1972 = vmatprep.mubr.f32.mxu0 %v116
  %1973 = vmatmul.mubr.f32.gmra.mrb[0].mxu0 %v115
  %v1974 = vpop.f32.mrb[0].mxu0
  %v1975 = vadd.f32 0.0, %v1974
  %v1976 = vpop.f32.mrb[0].mxu0
  %1977 = vmatprep.mubr.f32.mxu0 %v118
  %1978 = vmatmul.mubr.f32.gmra.mrb[0].mxu0 %v117
  %v1979 = vpop.f32.mrb[0].mxu0
  %v1980 = vadd.f32 0.0, %v1979
  %v1981 = vpop.f32.mrb[0].mxu0
  %1982 = vmatprep.mubr.f32.mxu0 %v120
  %1983 = vmatmul.mubr.f32.gmra.mrb[0].mxu0 %v119
  %v1984 = vpop.f32.mrb[0].mxu0
  %v1985 = vadd.f32 0.0, %v1984
  %v1986 = vpop.f32.mrb[0].mxu0
  %1987 = vmatprep.mubr.f32.mxu0 %v122
  %1988 = vmatmul.mubr.f32.gmra.mrb[0].mxu0 %v121
  %v1989 = vpop.f32.mrb[0].mxu0
  %v1990 = vadd.f32 0.0, %v1989
  %v1991 = vpop.f32.mrb[0].mxu0
  %1992 = vmatprep.mubr.f32.mxu0 %v124
  %1993 = vmatmul.mubr.f32.gmra.mrb[0].mxu0 %v123
  %v1994 = vpop.f32.mrb[0].mxu0
  %v1995 = vadd.f32 0.0, %v1994
  %v1996 = vpop.f32.mrb[0].mxu0
  %1997 = vmatprep.mubr.f32.mxu0 %v126
  %1998 = vmatmul.mubr.f32.gmra.mrb[0].mxu0 %v125
  %v1999 = vpop.f32.mrb[0].mxu0
  %v2000 = vadd.f32 0.0, %v1999
  %v2001 = vpop.f32.mrb[0].mxu0
  %2002 = vmatprep.mubr.f32.mxu0 %v128
  %2003 = vmatmul.mubr.f32.gmra.mrb[0].mxu0 %v127
  %v2004 = vpop.f32.mrb[0].mxu0
  %v2005 = vadd.f32 0.0, %v2004
  %v2006 = vpop.f32.mrb[0].mxu0
  %2007 = vmatprep.mubr.f32.mxu0 %v130
  %2008 = vmatmul.mubr.f32.gmra.mrb[0].mxu0 %v129
  %v2009 = vpop.f32.mrb[0].mxu0
  %v2010 = vadd.f32 0.0, %v2009
  %v2011 = vpop.f32.mrb[0].mxu0
  %2012 = vmatprep.mubr.f32.mxu0 %v132
  %2013 = vmatmul.mubr.f32.gmra.mrb[0].mxu0 %v131
  %v2014 = vpop.f32.mrb[0].mxu0
  %v2015 = vadd.f32 0.0, %v2014
  %v2016 = vpop.f32.mrb[0].mxu0
  %2017 = vmatprep.mubr.f32.mxu0 %v134
  %2018 = vmatmul.mubr.f32.gmra.mrb[0].mxu0 %v133
  %v2019 = vpop.f32.mrb[0].mxu0
  %v2020 = vadd.f32 0.0, %v2019
  %v2021 = vpop.f32.mrb[0].mxu0
  %2022 = vmatprep.mubr.f32.mxu0 %v136
  %2023 = vmatmul.mubr.f32.gmra.mrb[0].mxu0 %v135
  %v2024 = vpop.f32.mrb[0].mxu0
  %v2025 = vadd.f32 0.0, %v2024
  %v2026 = vpop.f32.mrb[0].mxu0
  %2027 = vmatprep.mubr.f32.mxu0 %v138
  %2028 = vmatmul.mubr.f32.gmra.mrb[0].mxu0 %v137
  %v2029 = vpop.f32.mrb[0].mxu0
  %v2030 = vadd.f32 0.0, %v2029
  %v2031 = vpop.f32.mrb[0].mxu0
  %2032 = vmatprep.mubr.f32.mxu0 %v140
  %2033 = vmatmul.mubr.f32.gmra.mrb[0].mxu0 %v139
  %v2034 = vpop.f32.mrb[0].mxu0
  %v2035 = vadd.f32 0.0, %v2034
  %v2036 = vpop.f32.mrb[0].mxu0
  %2037 = vmatprep.mubr.f32.mxu0 %v142
  %2038 = vmatmul.mubr.f32.gmra.mrb[0].mxu0 %v141
  %v2039 = vpop.f32.mrb[0].mxu0
  %v2040 = vadd.f32 0.0, %v2039
  %v2041 = vpop.f32.mrb[0].mxu0
  %2042 = vmatprep.mubr.f32.mxu0 %v144
  %2043 = vmatmul.mubr.f32.gmra.mrb[0].mxu0 %v143
  %v2044 = vpop.f32.mrb[0].mxu0
  %v2045 = vadd.f32 0.0, %v2044
  %v2046 = vpop.f32.mrb[0].mxu0
  %2047 = vmatprep.mubr.f32.mxu0 %v146
  %2048 = vmatmul.mubr.f32.gmra.mrb[0].mxu0 %v145
  %v2049 = vpop.f32.mrb[0].mxu0
  %v2050 = vadd.f32 0.0, %v2049
  %v2051 = vpop.f32.mrb[0].mxu0
  %2052 = vmatprep.mubr.f32.mxu0 %v148
  %2053 = vmatmul.mubr.f32.gmra.mrb[0].mxu0 %v147
  %v2054 = vpop.f32.mrb[0].mxu0
  %v2055 = vadd.f32 0.0, %v2054
  %v2056 = vpop.f32.mrb[0].mxu0
  %2057 = vmatprep.mubr.f32.mxu0 %v150
  %2058 = vmatmul.mubr.f32.gmra.mrb[0].mxu0 %v149
  %v2059 = vpop.f32.mrb[0].mxu0
  %v2060 = vadd.f32 0.0, %v2059
  %v2061 = vpop.f32.mrb[0].mxu0
  %2062 = vdwg.mxu0
  %s2063 = scalar_lea.vmem %s5, 256
  %v2064 = vld [vmem:[%s2063] sm:$0xff]
  %v2065 = vld [vmem:[%s2063 + $0x8] sm:$0xff]
  %v2066 = vld [vmem:[%s2063 + $0x10] sm:$0xff]
  %v2067 = vld [vmem:[%s2063 + $0x18] sm:$0xff]
  %v2068 = vld [vmem:[%s2063 + $0x20] sm:$0xff]
  %v2069 = vld [vmem:[%s2063 + $0x28] sm:$0xff]
  %v2070 = vld [vmem:[%s2063 + $0x30] sm:$0xff]
  %v2071 = vld [vmem:[%s2063 + $0x38] sm:$0xff]
  %v2072 = vld [vmem:[%s2063 + $0x40] sm:$0xff]
  %v2073 = vld [vmem:[%s2063 + $0x48] sm:$0xff]
  %v2074 = vld [vmem:[%s2063 + $0x50] sm:$0xff]
  %v2075 = vld [vmem:[%s2063 + $0x58] sm:$0xff]
  %v2076 = vld [vmem:[%s2063 + $0x60] sm:$0xff]
  %v2077 = vld [vmem:[%s2063 + $0x68] sm:$0xff]
  %v2078 = vld [vmem:[%s2063 + $0x70] sm:$0xff]
  %v2079 = vld [vmem:[%s2063 + $0x78] sm:$0xff]
  %v2080 = vld [vmem:[%s2063 + $0x80] sm:$0xff]
  %v2081 = vld [vmem:[%s2063 + $0x88] sm:$0xff]
  %v2082 = vld [vmem:[%s2063 + $0x90] sm:$0xff]
  %v2083 = vld [vmem:[%s2063 + $0x98] sm:$0xff]
  %v2084 = vld [vmem:[%s2063 + $0xa0] sm:$0xff]
  %v2085 = vld [vmem:[%s2063 + $0xa8] sm:$0xff]
  %v2086 = vld [vmem:[%s2063 + $0xb0] sm:$0xff]
  %v2087 = vld [vmem:[%s2063 + $0xb8] sm:$0xff]
  %v2088 = vld [vmem:[%s2063 + $0xc0] sm:$0xff]
  %v2089 = vld [vmem:[%s2063 + $0xc8] sm:$0xff]
  %v2090 = vld [vmem:[%s2063 + $0xd0] sm:$0xff]
  %v2091 = vld [vmem:[%s2063 + $0xd8] sm:$0xff]
  %v2092 = vld [vmem:[%s2063 + $0xe0] sm:$0xff]
  %v2093 = vld [vmem:[%s2063 + $0xe8] sm:$0xff]
  %v2094 = vld [vmem:[%s2063 + $0xf0] sm:$0xff]
  %v2095 = vld [vmem:[%s2063 + $0xf8] sm:$0xff]
  %v2096 = vmul.f32 %v962, %v2064
  %v2097 = vmul.f32 %v963, %v2065
  %v2098 = vmul.f32 %v964, %v2066
  %v2099 = vmul.f32 %v965, %v2067
  %v2100 = vmul.f32 %v966, %v2068
  %v2101 = vmul.f32 %v967, %v2069
  %v2102 = vmul.f32 %v968, %v2070
  %v2103 = vmul.f32 %v969, %v2071
  %v2104 = vmul.f32 %v970, %v2072
  %v2105 = vmul.f32 %v971, %v2073
  %v2106 = vmul.f32 %v972, %v2074
  %v2107 = vmul.f32 %v973, %v2075
  %v2108 = vmul.f32 %v974, %v2076
  %v2109 = vmul.f32 %v975, %v2077
  %v2110 = vmul.f32 %v976, %v2078
  %v2111 = vmul.f32 %v977, %v2079
  %v2112 = vmul.f32 %v978, %v2080
  %v2113 = vmul.f32 %v979, %v2081
  %v2114 = vmul.f32 %v980, %v2082
  %v2115 = vmul.f32 %v981, %v2083
  %v2116 = vmul.f32 %v982, %v2084
  %v2117 = vmul.f32 %v983, %v2085
  %v2118 = vmul.f32 %v984, %v2086
  %v2119 = vmul.f32 %v985, %v2087
  %v2120 = vmul.f32 %v986, %v2088
  %v2121 = vmul.f32 %v987, %v2089
  %v2122 = vmul.f32 %v988, %v2090
  %v2123 = vmul.f32 %v989, %v2091
  %v2124 = vmul.f32 %v990, %v2092
  %v2125 = vmul.f32 %v991, %v2093
  %v2126 = vmul.f32 %v992, %v2094
  %v2127 = vmul.f32 %v993, %v2095
  %2128 = vxpose.xlu0.b32.start [1/16] %v2096, 128
  %2129 = vxpose.xlu0.b32.cont [2/16] %v2097, 128
  %2130 = vxpose.xlu0.b32.cont [3/16] %v2098, 128
  %2131 = vxpose.xlu0.b32.cont [4/16] %v2099, 128
  %2132 = vxpose.xlu0.b32.cont [5/16] %v2100, 128
  %2133 = vxpose.xlu0.b32.cont [6/16] %v2101, 128
  %2134 = vxpose.xlu0.b32.cont [7/16] %v2102, 128
  %2135 = vxpose.xlu0.b32.cont [8/16] %v2103, 128
  %2136 = vxpose.xlu0.b32.cont [9/16] %v2104, 128
  %2137 = vxpose.xlu0.b32.cont [10/16] %v2105, 128
  %2138 = vxpose.xlu0.b32.cont [11/16] %v2106, 128
  %2139 = vxpose.xlu0.b32.cont [12/16] %v2107, 128
  %2140 = vxpose.xlu0.b32.cont [13/16] %v2108, 128
  %2141 = vxpose.xlu0.b32.cont [14/16] %v2109, 128
  %2142 = vxpose.xlu0.b32.cont [15/16] %v2110, 128
  %2143 = vxpose.xlu0.b32.end [16/16] %v2111, 128
  %v2144 = vpop.trf.xlu0
  %v2145 = vpop.trf.xlu0
  %v2146 = vpop.trf.xlu0
  %v2147 = vpop.trf.xlu0
  %v2148 = vpop.trf.xlu0
  %v2149 = vpop.trf.xlu0
  %v2150 = vpop.trf.xlu0
  %v2151 = vpop.trf.xlu0
  %v2152 = vpop.trf.xlu0
  %v2153 = vpop.trf.xlu0
  %v2154 = vpop.trf.xlu0
  %v2155 = vpop.trf.xlu0
  %v2156 = vpop.trf.xlu0
  %v2157 = vpop.trf.xlu0
  %v2158 = vpop.trf.xlu0
  %v2159 = vpop.trf.xlu0
  %2160 = vxpose.xlu0.b32.start [1/16] %v2112, 128
  %2161 = vxpose.xlu0.b32.cont [2/16] %v2113, 128
  %2162 = vxpose.xlu0.b32.cont [3/16] %v2114, 128
  %2163 = vxpose.xlu0.b32.cont [4/16] %v2115, 128
  %2164 = vxpose.xlu0.b32.cont [5/16] %v2116, 128
  %2165 = vxpose.xlu0.b32.cont [6/16] %v2117, 128
  %2166 = vxpose.xlu0.b32.cont [7/16] %v2118, 128
  %2167 = vxpose.xlu0.b32.cont [8/16] %v2119, 128
  %2168 = vxpose.xlu0.b32.cont [9/16] %v2120, 128
  %2169 = vxpose.xlu0.b32.cont [10/16] %v2121, 128
  %2170 = vxpose.xlu0.b32.cont [11/16] %v2122, 128
  %2171 = vxpose.xlu0.b32.cont [12/16] %v2123, 128
  %2172 = vxpose.xlu0.b32.cont [13/16] %v2124, 128
  %2173 = vxpose.xlu0.b32.cont [14/16] %v2125, 128
  %2174 = vxpose.xlu0.b32.cont [15/16] %v2126, 128
  %2175 = vxpose.xlu0.b32.end [16/16] %v2127, 128
  %v2176 = vpop.trf.xlu0
  %v2177 = vpop.trf.xlu0
  %v2178 = vpop.trf.xlu0
  %v2179 = vpop.trf.xlu0
  %v2180 = vpop.trf.xlu0
  %v2181 = vpop.trf.xlu0
  %v2182 = vpop.trf.xlu0
  %v2183 = vpop.trf.xlu0
  %v2184 = vpop.trf.xlu0
  %v2185 = vpop.trf.xlu0
  %v2186 = vpop.trf.xlu0
  %v2187 = vpop.trf.xlu0
  %v2188 = vpop.trf.xlu0
  %v2189 = vpop.trf.xlu0
  %v2190 = vpop.trf.xlu0
  %v2191 = vpop.trf.xlu0
  %2192 = vmatprep.subr.mxu0 0.0
  %2193 = vmatpush1.msra.mxu0 %v1774
  %2194 = vmatprep.subr.mxu0 0.0
  %2195 = vmatpush1.msra.mxu0 %v1775
  %2196 = vmatprep.subr.mxu0 0.0
  %2197 = vmatpush1.msra.mxu0 %v1776
  %2198 = vmatprep.subr.mxu0 0.0
  %2199 = vmatpush1.msra.mxu0 %v1777
  %2200 = vmatprep.subr.mxu0 0.0
  %2201 = vmatpush1.msra.mxu0 %v1778
  %2202 = vmatprep.subr.mxu0 0.0
  %2203 = vmatpush1.msra.mxu0 %v1779
  %2204 = vmatprep.subr.mxu0 0.0
  %2205 = vmatpush1.msra.mxu0 %v1780
  %2206 = vmatprep.subr.mxu0 0.0
  %2207 = vmatpush1.msra.mxu0 %v1781
  %2208 = vmatprep.subr.mxu0 0.0
  %2209 = vmatpush1.msra.mxu0 %v1782
  %2210 = vmatprep.subr.mxu0 0.0
  %2211 = vmatpush1.msra.mxu0 %v1783
  %2212 = vmatprep.subr.mxu0 0.0
  %2213 = vmatpush1.msra.mxu0 %v1784
  %2214 = vmatprep.subr.mxu0 0.0
  %2215 = vmatpush1.msra.mxu0 %v1785
  %2216 = vmatprep.subr.mxu0 0.0
  %2217 = vmatpush1.msra.mxu0 %v1786
  %2218 = vmatprep.subr.mxu0 0.0
  %2219 = vmatpush1.msra.mxu0 %v1787
  %2220 = vmatprep.subr.mxu0 0.0
  %2221 = vmatpush1.msra.mxu0 %v1788
  %2222 = vmatprep.subr.mxu0 0.0
  %2223 = vmatpush1.msra.mxu0 %v1789
  %2224 = vmatprep.subr.mxu0 0.0
  %2225 = vmatpush1.msra.mxu0 %v1790
  %2226 = vmatprep.subr.mxu0 0.0
  %2227 = vmatpush1.msra.mxu0 %v1791
  %2228 = vmatprep.subr.mxu0 0.0
  %2229 = vmatpush1.msra.mxu0 %v1792
  %2230 = vmatprep.subr.mxu0 0.0
  %2231 = vmatpush1.msra.mxu0 %v1793
  %2232 = vmatprep.subr.mxu0 0.0
  %2233 = vmatpush1.msra.mxu0 %v1794
  %2234 = vmatprep.subr.mxu0 0.0
  %2235 = vmatpush1.msra.mxu0 %v1795
  %2236 = vmatprep.subr.mxu0 0.0
  %2237 = vmatpush1.msra.mxu0 %v1796
  %2238 = vmatprep.subr.mxu0 0.0
  %2239 = vmatpush1.msra.mxu0 %v1797
  %2240 = vmatprep.subr.mxu0 0.0
  %2241 = vmatpush1.msra.mxu0 %v1798
  %2242 = vmatprep.subr.mxu0 0.0
  %2243 = vmatpush1.msra.mxu0 %v1799
  %2244 = vmatprep.subr.mxu0 0.0
  %2245 = vmatpush1.msra.mxu0 %v1800
  %2246 = vmatprep.subr.mxu0 0.0
  %2247 = vmatpush1.msra.mxu0 %v1801
  %2248 = vmatprep.subr.mxu0 0.0
  %2249 = vmatpush1.msra.mxu0 %v1802
  %2250 = vmatprep.subr.mxu0 0.0
  %2251 = vmatpush1.msra.mxu0 %v1803
  %2252 = vmatprep.subr.mxu0 0.0
  %2253 = vmatpush1.msra.mxu0 %v1804
  %2254 = vmatprep.subr.mxu0 0.0
  %2255 = vmatpush1.msra.mxu0 %v1805
  %2256 = vmatprep.mubr.f32.mxu0 %v2176
  %2257 = vmatmul.mubr.f32.gmra.mrb[0].mxu0 %v2144
  %v2258 = vpop.f32.mrb[0].mxu0
  %v2259 = vadd.f32 0.0, %v2258
  %v2260 = vpop.f32.mrb[0].mxu0
  %2261 = vmatprep.mubr.f32.mxu0 %v2177
  %2262 = vmatmul.mubr.f32.gmra.mrb[0].mxu0 %v2145
  %v2263 = vpop.f32.mrb[0].mxu0
  %v2264 = vadd.f32 0.0, %v2263
  %v2265 = vpop.f32.mrb[0].mxu0
  %2266 = vmatprep.mubr.f32.mxu0 %v2178
  %2267 = vmatmul.mubr.f32.gmra.mrb[0].mxu0 %v2146
  %v2268 = vpop.f32.mrb[0].mxu0
  %v2269 = vadd.f32 0.0, %v2268
  %v2270 = vpop.f32.mrb[0].mxu0
  %2271 = vmatprep.mubr.f32.mxu0 %v2179
  %2272 = vmatmul.mubr.f32.gmra.mrb[0].mxu0 %v2147
  %v2273 = vpop.f32.mrb[0].mxu0
  %v2274 = vadd.f32 0.0, %v2273
  %v2275 = vpop.f32.mrb[0].mxu0
  %2276 = vmatprep.mubr.f32.mxu0 %v2180
  %2277 = vmatmul.mubr.f32.gmra.mrb[0].mxu0 %v2148
  %v2278 = vpop.f32.mrb[0].mxu0
  %v2279 = vadd.f32 0.0, %v2278
  %v2280 = vpop.f32.mrb[0].mxu0
  %2281 = vmatprep.mubr.f32.mxu0 %v2181
  %2282 = vmatmul.mubr.f32.gmra.mrb[0].mxu0 %v2149
  %v2283 = vpop.f32.mrb[0].mxu0
  %v2284 = vadd.f32 0.0, %v2283
  %v2285 = vpop.f32.mrb[0].mxu0
  %2286 = vmatprep.mubr.f32.mxu0 %v2182
  %2287 = vmatmul.mubr.f32.gmra.mrb[0].mxu0 %v2150
  %v2288 = vpop.f32.mrb[0].mxu0
  %v2289 = vadd.f32 0.0, %v2288
  %v2290 = vpop.f32.mrb[0].mxu0
  %2291 = vmatprep.mubr.f32.mxu0 %v2183
  %2292 = vmatmul.mubr.f32.gmra.mrb[0].mxu0 %v2151
  %v2293 = vpop.f32.mrb[0].mxu0
  %v2294 = vadd.f32 0.0, %v2293
  %v2295 = vpop.f32.mrb[0].mxu0
  %2296 = vdwg.mxu0
  %v2298 = vsel %vm1452, %v2096, 0
  %v2301 = vsel %vm1452, %v2097, 0
  %v2304 = vsel %vm1452, %v2098, 0
  %v2307 = vsel %vm1452, %v2099, 0
  %v2310 = vsel %vm1452, %v2100, 0
  %v2313 = vsel %vm1452, %v2101, 0
  %v2316 = vsel %vm1452, %v2102, 0
  %v2319 = vsel %vm1452, %v2103, 0
  %v2322 = vsel %vm1452, %v2104, 0
  %v2325 = vsel %vm1452, %v2105, 0
  %v2328 = vsel %vm1452, %v2106, 0
  %v2331 = vsel %vm1452, %v2107, 0
  %v2334 = vsel %vm1452, %v2108, 0
  %v2337 = vsel %vm1452, %v2109, 0
  %v2340 = vsel %vm1452, %v2110, 0
  %v2343 = vsel %vm1452, %v2111, 0
  %v2346 = vsel %vm1452, %v2112, 0
  %v2349 = vsel %vm1452, %v2113, 0
  %v2352 = vsel %vm1452, %v2114, 0
  %v2355 = vsel %vm1452, %v2115, 0
  %v2358 = vsel %vm1452, %v2116, 0
  %v2361 = vsel %vm1452, %v2117, 0
  %v2364 = vsel %vm1452, %v2118, 0
  %v2367 = vsel %vm1452, %v2119, 0
  %v2370 = vsel %vm1452, %v2120, 0
  %v2373 = vsel %vm1452, %v2121, 0
  %v2376 = vsel %vm1452, %v2122, 0
  %v2379 = vsel %vm1452, %v2123, 0
  %v2382 = vsel %vm1452, %v2124, 0
  %v2385 = vsel %vm1452, %v2125, 0
  %v2388 = vsel %vm1452, %v2126, 0
  %v2391 = vsel %vm1452, %v2127, 0
  %2393 = vmatprep.subr.mxu0 0.0
  %2394 = vmatpush1.msra.mxu0 %v2259
  %2395 = vmatprep.subr.mxu0 0.0
  %2396 = vmatpush1.msra.mxu0 %v2264
  %2397 = vmatprep.subr.mxu0 0.0
  %2398 = vmatpush1.msra.mxu0 %v2269
  %2399 = vmatprep.subr.mxu0 0.0
  %2400 = vmatpush1.msra.mxu0 %v2274
  %2401 = vmatprep.subr.mxu0 0.0
  %2402 = vmatpush1.msra.mxu0 %v2279
  %2403 = vmatprep.subr.mxu0 0.0
  %2404 = vmatpush1.msra.mxu0 %v2284
  %2405 = vmatprep.subr.mxu0 0.0
  %2406 = vmatpush1.msra.mxu0 %v2289
  %2407 = vmatprep.subr.mxu0 0.0
  %2408 = vmatpush1.msra.mxu0 %v2294
  %2409 = vmatprep.subr.mxu0 0.0
  %2410 = vmatpush1.msra.mxu0 0.0
  %2411 = vmatprep.subr.mxu0 0.0
  %2412 = vmatpush1.msra.mxu0 0.0
  %2413 = vmatprep.subr.mxu0 0.0
  %2414 = vmatpush1.msra.mxu0 0.0
  %2415 = vmatprep.subr.mxu0 0.0
  %2416 = vmatpush1.msra.mxu0 0.0
  %2417 = vmatprep.subr.mxu0 0.0
  %2418 = vmatpush1.msra.mxu0 0.0
  %2419 = vmatprep.subr.mxu0 0.0
  %2420 = vmatpush1.msra.mxu0 0.0
  %2421 = vmatprep.subr.mxu0 0.0
  %2422 = vmatpush1.msra.mxu0 0.0
  %2423 = vmatprep.subr.mxu0 0.0
  %2424 = vmatpush1.msra.mxu0 0.0
  %2425 = vmatprep.subr.mxu0 0.0
  %2426 = vmatpush1.msra.mxu0 0.0
  %2427 = vmatprep.subr.mxu0 0.0
  %2428 = vmatpush1.msra.mxu0 0.0
  %2429 = vmatprep.subr.mxu0 0.0
  %2430 = vmatpush1.msra.mxu0 0.0
  %2431 = vmatprep.subr.mxu0 0.0
  %2432 = vmatpush1.msra.mxu0 0.0
  %2433 = vmatprep.subr.mxu0 0.0
  %2434 = vmatpush1.msra.mxu0 0.0
  %2435 = vmatprep.subr.mxu0 0.0
  %2436 = vmatpush1.msra.mxu0 0.0
  %2437 = vmatprep.subr.mxu0 0.0
  %2438 = vmatpush1.msra.mxu0 0.0
  %2439 = vmatprep.subr.mxu0 0.0
  %2440 = vmatpush1.msra.mxu0 0.0
  %2441 = vmatprep.subr.mxu0 0.0
  %2442 = vmatpush1.msra.mxu0 0.0
  %2443 = vmatprep.subr.mxu0 0.0
  %2444 = vmatpush1.msra.mxu0 0.0
  %2445 = vmatprep.subr.mxu0 0.0
  %2446 = vmatpush1.msra.mxu0 0.0
  %2447 = vmatprep.subr.mxu0 0.0
  %2448 = vmatpush1.msra.mxu0 0.0
  %2449 = vmatprep.subr.mxu0 0.0
  %2450 = vmatpush1.msra.mxu0 0.0
  %2451 = vmatprep.subr.mxu0 0.0
  %2452 = vmatpush1.msra.mxu0 0.0
  %2453 = vmatprep.subr.mxu0 0.0
  %2454 = vmatpush1.msra.mxu0 0.0
  %2455 = vmatprep.subr.mxu0 0.0
  %2456 = vmatpush1.msra.mxu0 0.0
  %2457 = vmatprep.mubr.f32.mxu0 0.0
  %2458 = vmatmul.mubr.f32.gmra.mrb[0].mxu0 %v2298
  %v2459 = vpop.f32.mrb[0].mxu0
  %v2460 = vadd.f32 0.0, %v2459
  %v2461 = vpop.f32.mrb[0].mxu0
  %2462 = vmatprep.mubr.f32.mxu0 0.0
  %2463 = vmatmul.mubr.f32.gmra.mrb[0].mxu0 %v2301
  %v2464 = vpop.f32.mrb[0].mxu0
  %v2465 = vadd.f32 0.0, %v2464
  %v2466 = vpop.f32.mrb[0].mxu0
  %2467 = vmatprep.mubr.f32.mxu0 0.0
  %2468 = vmatmul.mubr.f32.gmra.mrb[0].mxu0 %v2304
  %v2469 = vpop.f32.mrb[0].mxu0
  %v2470 = vadd.f32 0.0, %v2469
  %v2471 = vpop.f32.mrb[0].mxu0
  %2472 = vmatprep.mubr.f32.mxu0 0.0
  %2473 = vmatmul.mubr.f32.gmra.mrb[0].mxu0 %v2307
  %v2474 = vpop.f32.mrb[0].mxu0
  %v2475 = vadd.f32 0.0, %v2474
  %v2476 = vpop.f32.mrb[0].mxu0
  %2477 = vmatprep.mubr.f32.mxu0 0.0
  %2478 = vmatmul.mubr.f32.gmra.mrb[0].mxu0 %v2310
  %v2479 = vpop.f32.mrb[0].mxu0
  %v2480 = vadd.f32 0.0, %v2479
  %v2481 = vpop.f32.mrb[0].mxu0
  %2482 = vmatprep.mubr.f32.mxu0 0.0
  %2483 = vmatmul.mubr.f32.gmra.mrb[0].mxu0 %v2313
  %v2484 = vpop.f32.mrb[0].mxu0
  %v2485 = vadd.f32 0.0, %v2484
  %v2486 = vpop.f32.mrb[0].mxu0
  %2487 = vmatprep.mubr.f32.mxu0 0.0
  %2488 = vmatmul.mubr.f32.gmra.mrb[0].mxu0 %v2316
  %v2489 = vpop.f32.mrb[0].mxu0
  %v2490 = vadd.f32 0.0, %v2489
  %v2491 = vpop.f32.mrb[0].mxu0
  %2492 = vmatprep.mubr.f32.mxu0 0.0
  %2493 = vmatmul.mubr.f32.gmra.mrb[0].mxu0 %v2319
  %v2494 = vpop.f32.mrb[0].mxu0
  %v2495 = vadd.f32 0.0, %v2494
  %v2496 = vpop.f32.mrb[0].mxu0
  %2497 = vmatprep.mubr.f32.mxu0 0.0
  %2498 = vmatmul.mubr.f32.gmra.mrb[0].mxu0 %v2322
  %v2499 = vpop.f32.mrb[0].mxu0
  %v2500 = vadd.f32 0.0, %v2499
  %v2501 = vpop.f32.mrb[0].mxu0
  %2502 = vmatprep.mubr.f32.mxu0 0.0
  %2503 = vmatmul.mubr.f32.gmra.mrb[0].mxu0 %v2325
  %v2504 = vpop.f32.mrb[0].mxu0
  %v2505 = vadd.f32 0.0, %v2504
  %v2506 = vpop.f32.mrb[0].mxu0
  %2507 = vmatprep.mubr.f32.mxu0 0.0
  %2508 = vmatmul.mubr.f32.gmra.mrb[0].mxu0 %v2328
  %v2509 = vpop.f32.mrb[0].mxu0
  %v2510 = vadd.f32 0.0, %v2509
  %v2511 = vpop.f32.mrb[0].mxu0
  %2512 = vmatprep.mubr.f32.mxu0 0.0
  %2513 = vmatmul.mubr.f32.gmra.mrb[0].mxu0 %v2331
  %v2514 = vpop.f32.mrb[0].mxu0
  %v2515 = vadd.f32 0.0, %v2514
  %v2516 = vpop.f32.mrb[0].mxu0
  %2517 = vmatprep.mubr.f32.mxu0 0.0
  %2518 = vmatmul.mubr.f32.gmra.mrb[0].mxu0 %v2334
  %v2519 = vpop.f32.mrb[0].mxu0
  %v2520 = vadd.f32 0.0, %v2519
  %v2521 = vpop.f32.mrb[0].mxu0
  %2522 = vmatprep.mubr.f32.mxu0 0.0
  %2523 = vmatmul.mubr.f32.gmra.mrb[0].mxu0 %v2337
  %v2524 = vpop.f32.mrb[0].mxu0
  %v2525 = vadd.f32 0.0, %v2524
  %v2526 = vpop.f32.mrb[0].mxu0
  %2527 = vmatprep.mubr.f32.mxu0 0.0
  %2528 = vmatmul.mubr.f32.gmra.mrb[0].mxu0 %v2340
  %v2529 = vpop.f32.mrb[0].mxu0
  %v2530 = vadd.f32 0.0, %v2529
  %v2531 = vpop.f32.mrb[0].mxu0
  %2532 = vmatprep.mubr.f32.mxu0 0.0
  %2533 = vmatmul.mubr.f32.gmra.mrb[0].mxu0 %v2343
  %v2534 = vpop.f32.mrb[0].mxu0
  %v2535 = vadd.f32 0.0, %v2534
  %v2536 = vpop.f32.mrb[0].mxu0
  %2537 = vmatprep.mubr.f32.mxu0 0.0
  %2538 = vmatmul.mubr.f32.gmra.mrb[0].mxu0 %v2346
  %v2539 = vpop.f32.mrb[0].mxu0
  %v2540 = vadd.f32 0.0, %v2539
  %v2541 = vpop.f32.mrb[0].mxu0
  %2542 = vmatprep.mubr.f32.mxu0 0.0
  %2543 = vmatmul.mubr.f32.gmra.mrb[0].mxu0 %v2349
  %v2544 = vpop.f32.mrb[0].mxu0
  %v2545 = vadd.f32 0.0, %v2544
  %v2546 = vpop.f32.mrb[0].mxu0
  %2547 = vmatprep.mubr.f32.mxu0 0.0
  %2548 = vmatmul.mubr.f32.gmra.mrb[0].mxu0 %v2352
  %v2549 = vpop.f32.mrb[0].mxu0
  %v2550 = vadd.f32 0.0, %v2549
  %v2551 = vpop.f32.mrb[0].mxu0
  %2552 = vmatprep.mubr.f32.mxu0 0.0
  %2553 = vmatmul.mubr.f32.gmra.mrb[0].mxu0 %v2355
  %v2554 = vpop.f32.mrb[0].mxu0
  %v2555 = vadd.f32 0.0, %v2554
  %v2556 = vpop.f32.mrb[0].mxu0
  %2557 = vmatprep.mubr.f32.mxu0 0.0
  %2558 = vmatmul.mubr.f32.gmra.mrb[0].mxu0 %v2358
  %v2559 = vpop.f32.mrb[0].mxu0
  %v2560 = vadd.f32 0.0, %v2559
  %v2561 = vpop.f32.mrb[0].mxu0
  %2562 = vmatprep.mubr.f32.mxu0 0.0
  %2563 = vmatmul.mubr.f32.gmra.mrb[0].mxu0 %v2361
  %v2564 = vpop.f32.mrb[0].mxu0
  %v2565 = vadd.f32 0.0, %v2564
  %v2566 = vpop.f32.mrb[0].mxu0
  %2567 = vmatprep.mubr.f32.mxu0 0.0
  %2568 = vmatmul.mubr.f32.gmra.mrb[0].mxu0 %v2364
  %v2569 = vpop.f32.mrb[0].mxu0
  %v2570 = vadd.f32 0.0, %v2569
  %v2571 = vpop.f32.mrb[0].mxu0
  %2572 = vmatprep.mubr.f32.mxu0 0.0
  %2573 = vmatmul.mubr.f32.gmra.mrb[0].mxu0 %v2367
  %v2574 = vpop.f32.mrb[0].mxu0
  %v2575 = vadd.f32 0.0, %v2574
  %v2576 = vpop.f32.mrb[0].mxu0
  %2577 = vmatprep.mubr.f32.mxu0 0.0
  %2578 = vmatmul.mubr.f32.gmra.mrb[0].mxu0 %v2370
  %v2579 = vpop.f32.mrb[0].mxu0
  %v2580 = vadd.f32 0.0, %v2579
  %v2581 = vpop.f32.mrb[0].mxu0
  %2582 = vmatprep.mubr.f32.mxu0 0.0
  %2583 = vmatmul.mubr.f32.gmra.mrb[0].mxu0 %v2373
  %v2584 = vpop.f32.mrb[0].mxu0
  %v2585 = vadd.f32 0.0, %v2584
  %v2586 = vpop.f32.mrb[0].mxu0
  %2587 = vmatprep.mubr.f32.mxu0 0.0
  %2588 = vmatmul.mubr.f32.gmra.mrb[0].mxu0 %v2376
  %v2589 = vpop.f32.mrb[0].mxu0
  %v2590 = vadd.f32 0.0, %v2589
  %v2591 = vpop.f32.mrb[0].mxu0
  %2592 = vmatprep.mubr.f32.mxu0 0.0
  %2593 = vmatmul.mubr.f32.gmra.mrb[0].mxu0 %v2379
  %v2594 = vpop.f32.mrb[0].mxu0
  %v2595 = vadd.f32 0.0, %v2594
  %v2596 = vpop.f32.mrb[0].mxu0
  %2597 = vmatprep.mubr.f32.mxu0 0.0
  %2598 = vmatmul.mubr.f32.gmra.mrb[0].mxu0 %v2382
  %v2599 = vpop.f32.mrb[0].mxu0
  %v2600 = vadd.f32 0.0, %v2599
  %v2601 = vpop.f32.mrb[0].mxu0
  %2602 = vmatprep.mubr.f32.mxu0 0.0
  %2603 = vmatmul.mubr.f32.gmra.mrb[0].mxu0 %v2385
  %v2604 = vpop.f32.mrb[0].mxu0
  %v2605 = vadd.f32 0.0, %v2604
  %v2606 = vpop.f32.mrb[0].mxu0
  %2607 = vmatprep.mubr.f32.mxu0 0.0
  %2608 = vmatmul.mubr.f32.gmra.mrb[0].mxu0 %v2388
  %v2609 = vpop.f32.mrb[0].mxu0
  %v2610 = vadd.f32 0.0, %v2609
  %v2611 = vpop.f32.mrb[0].mxu0
  %2612 = vmatprep.mubr.f32.mxu0 0.0
  %2613 = vmatmul.mubr.f32.gmra.mrb[0].mxu0 %v2391
  %v2614 = vpop.f32.mrb[0].mxu0
  %v2615 = vadd.f32 0.0, %v2614
  %v2616 = vpop.f32.mrb[0].mxu0
  %2617 = vdwg.mxu0
  %v2618 = vadd.f32 %v1905, %v2460
  %v2619 = vadd.f32 %v1910, %v2465
  %v2620 = vadd.f32 %v1915, %v2470
  %v2621 = vadd.f32 %v1920, %v2475
  %v2622 = vadd.f32 %v1925, %v2480
  %v2623 = vadd.f32 %v1930, %v2485
  %v2624 = vadd.f32 %v1935, %v2490
  %v2625 = vadd.f32 %v1940, %v2495
  %v2626 = vadd.f32 %v1945, %v2500
  %v2627 = vadd.f32 %v1950, %v2505
  %v2628 = vadd.f32 %v1955, %v2510
  %v2629 = vadd.f32 %v1960, %v2515
  %v2630 = vadd.f32 %v1965, %v2520
  %v2631 = vadd.f32 %v1970, %v2525
  %v2632 = vadd.f32 %v1975, %v2530
  %v2633 = vadd.f32 %v1980, %v2535
  %v2634 = vadd.f32 %v1985, %v2540
  %v2635 = vadd.f32 %v1990, %v2545
  %v2636 = vadd.f32 %v1995, %v2550
  %v2637 = vadd.f32 %v2000, %v2555
  %v2638 = vadd.f32 %v2005, %v2560
  %v2639 = vadd.f32 %v2010, %v2565
  %v2640 = vadd.f32 %v2015, %v2570
  %v2641 = vadd.f32 %v2020, %v2575
  %v2642 = vadd.f32 %v2025, %v2580
  %v2643 = vadd.f32 %v2030, %v2585
  %v2644 = vadd.f32 %v2035, %v2590
  %v2645 = vadd.f32 %v2040, %v2595
  %v2646 = vadd.f32 %v2045, %v2600
  %v2647 = vadd.f32 %v2050, %v2605
  %v2648 = vadd.f32 %v2055, %v2610
  %v2649 = vadd.f32 %v2060, %v2615
  %v2650 = vadd.f32 %v1806, %v2618
  %v2651 = vadd.f32 %v1807, %v2619
  %v2652 = vadd.f32 %v1808, %v2620
  %v2653 = vadd.f32 %v1809, %v2621
  %v2654 = vadd.f32 %v1810, %v2622
  %v2655 = vadd.f32 %v1811, %v2623
  %v2656 = vadd.f32 %v1812, %v2624
  %v2657 = vadd.f32 %v1813, %v2625
  %v2658 = vadd.f32 %v1814, %v2626
  %v2659 = vadd.f32 %v1815, %v2627
  %v2660 = vadd.f32 %v1816, %v2628
  %v2661 = vadd.f32 %v1817, %v2629
  %v2662 = vadd.f32 %v1818, %v2630
  %v2663 = vadd.f32 %v1819, %v2631
  %v2664 = vadd.f32 %v1820, %v2632
  %v2665 = vadd.f32 %v1821, %v2633
  %v2666 = vadd.f32 %v1822, %v2634
  %v2667 = vadd.f32 %v1823, %v2635
  %v2668 = vadd.f32 %v1824, %v2636
  %v2669 = vadd.f32 %v1825, %v2637
  %v2670 = vadd.f32 %v1826, %v2638
  %v2671 = vadd.f32 %v1827, %v2639
  %v2672 = vadd.f32 %v1828, %v2640
  %v2673 = vadd.f32 %v1829, %v2641
  %v2674 = vadd.f32 %v1830, %v2642
  %v2675 = vadd.f32 %v1831, %v2643
  %v2676 = vadd.f32 %v1832, %v2644
  %v2677 = vadd.f32 %v1833, %v2645
  %v2678 = vadd.f32 %v1834, %v2646
  %v2679 = vadd.f32 %v1835, %v2647
  %v2680 = vadd.f32 %v1836, %v2648
  %v2681 = vadd.f32 %v1837, %v2649
  %v2682 = vmul.f32 %v2650, 0.0101
  %v2683 = vmul.f32 %v2651, 0.0101
  %v2684 = vmul.f32 %v2652, 0.0101
  %v2685 = vmul.f32 %v2653, 0.0101
  %v2686 = vmul.f32 %v2654, 0.0101
  %v2687 = vmul.f32 %v2655, 0.0101
  %v2688 = vmul.f32 %v2656, 0.0101
  %v2689 = vmul.f32 %v2657, 0.0101
  %v2690 = vmul.f32 %v2658, 0.0101
  %v2691 = vmul.f32 %v2659, 0.0101
  %v2692 = vmul.f32 %v2660, 0.0101
  %v2693 = vmul.f32 %v2661, 0.0101
  %v2694 = vmul.f32 %v2662, 0.0101
  %v2695 = vmul.f32 %v2663, 0.0101
  %v2696 = vmul.f32 %v2664, 0.0101
  %v2697 = vmul.f32 %v2665, 0.0101
  %v2698 = vmul.f32 %v2666, 0.0101
  %v2699 = vmul.f32 %v2667, 0.0101
  %v2700 = vmul.f32 %v2668, 0.0101
  %v2701 = vmul.f32 %v2669, 0.0101
  %v2702 = vmul.f32 %v2670, 0.0101
  %v2703 = vmul.f32 %v2671, 0.0101
  %v2704 = vmul.f32 %v2672, 0.0101
  %v2705 = vmul.f32 %v2673, 0.0101
  %v2706 = vmul.f32 %v2674, 0.0101
  %v2707 = vmul.f32 %v2675, 0.0101
  %v2708 = vmul.f32 %v2676, 0.0101
  %v2709 = vmul.f32 %v2677, 0.0101
  %v2710 = vmul.f32 %v2678, 0.0101
  %v2711 = vmul.f32 %v2679, 0.0101
  %v2712 = vmul.f32 %v2680, 0.0101
  %v2713 = vmul.f32 %v2681, 0.0101
  %2746 = vrot.lane.b32.xlu0 %v1061, 32
  %v2747 = vpop.permute.xlu0 %2746
  %2748 = vrot.lane.b32.xlu0 %v1066, 32
  %v2749 = vpop.permute.xlu0 %2748
  %2750 = vrot.lane.b32.xlu0 %v1071, 32
  %v2751 = vpop.permute.xlu0 %2750
  %2752 = vrot.lane.b32.xlu0 %v1076, 32
  %v2753 = vpop.permute.xlu0 %2752
  %2754 = vrot.lane.b32.xlu0 %v1081, 32
  %v2755 = vpop.permute.xlu0 %2754
  %2756 = vrot.lane.b32.xlu0 %v1086, 32
  %v2757 = vpop.permute.xlu0 %2756
  %2758 = vrot.lane.b32.xlu0 %v1091, 32
  %v2759 = vpop.permute.xlu0 %2758
  %2760 = vrot.lane.b32.xlu0 %v1096, 32
  %v2761 = vpop.permute.xlu0 %2760
  %2762 = vrot.lane.b32.xlu0 %v1101, 32
  %v2763 = vpop.permute.xlu0 %2762
  %2764 = vrot.lane.b32.xlu0 %v1106, 32
  %v2765 = vpop.permute.xlu0 %2764
  %2766 = vrot.lane.b32.xlu0 %v1111, 32
  %v2767 = vpop.permute.xlu0 %2766
  %2768 = vrot.lane.b32.xlu0 %v1116, 32
  %v2769 = vpop.permute.xlu0 %2768
  %2770 = vrot.lane.b32.xlu0 %v1121, 32
  %v2771 = vpop.permute.xlu0 %2770
  %2772 = vrot.lane.b32.xlu0 %v1126, 32
  %v2773 = vpop.permute.xlu0 %2772
  %2774 = vrot.lane.b32.xlu0 %v1131, 32
  %v2775 = vpop.permute.xlu0 %2774
  %2776 = vrot.lane.b32.xlu0 %v1136, 32
  %v2777 = vpop.permute.xlu0 %2776
  %2778 = vrot.lane.b32.xlu0 %v1141, 32
  %v2779 = vpop.permute.xlu0 %2778
  %2780 = vrot.lane.b32.xlu0 %v1146, 32
  %v2781 = vpop.permute.xlu0 %2780
  %2782 = vrot.lane.b32.xlu0 %v1151, 32
  %v2783 = vpop.permute.xlu0 %2782
  %2784 = vrot.lane.b32.xlu0 %v1156, 32
  %v2785 = vpop.permute.xlu0 %2784
  %2786 = vrot.lane.b32.xlu0 %v1161, 32
  %v2787 = vpop.permute.xlu0 %2786
  %2788 = vrot.lane.b32.xlu0 %v1166, 32
  %v2789 = vpop.permute.xlu0 %2788
  %2790 = vrot.lane.b32.xlu0 %v1171, 32
  %v2791 = vpop.permute.xlu0 %2790
  %2792 = vrot.lane.b32.xlu0 %v1176, 32
  %v2793 = vpop.permute.xlu0 %2792
  %2794 = vrot.lane.b32.xlu0 %v1181, 32
  %v2795 = vpop.permute.xlu0 %2794
  %2796 = vrot.lane.b32.xlu0 %v1186, 32
  %v2797 = vpop.permute.xlu0 %2796
  %2798 = vrot.lane.b32.xlu0 %v1191, 32
  %v2799 = vpop.permute.xlu0 %2798
  %2800 = vrot.lane.b32.xlu0 %v1196, 32
  %v2801 = vpop.permute.xlu0 %2800
  %2802 = vrot.lane.b32.xlu0 %v1201, 32
  %v2803 = vpop.permute.xlu0 %2802
  %2804 = vrot.lane.b32.xlu0 %v1206, 32
  %v2805 = vpop.permute.xlu0 %2804
  %2806 = vrot.lane.b32.xlu0 %v1211, 32
  %v2807 = vpop.permute.xlu0 %2806
  %2808 = vrot.lane.b32.xlu0 %v1216, 32
  %v2809 = vpop.permute.xlu0 %2808
  %2874 = vrot.lane.b32.xlu0 %v1905, 64
  %v2875 = vpop.permute.xlu0 %2874
  %2876 = vrot.lane.b32.xlu0 %v1910, 64
  %v2877 = vpop.permute.xlu0 %2876
  %2878 = vrot.lane.b32.xlu0 %v1915, 64
  %v2879 = vpop.permute.xlu0 %2878
  %2880 = vrot.lane.b32.xlu0 %v1920, 64
  %v2881 = vpop.permute.xlu0 %2880
  %2882 = vrot.lane.b32.xlu0 %v1925, 64
  %v2883 = vpop.permute.xlu0 %2882
  %2884 = vrot.lane.b32.xlu0 %v1930, 64
  %v2885 = vpop.permute.xlu0 %2884
  %2886 = vrot.lane.b32.xlu0 %v1935, 64
  %v2887 = vpop.permute.xlu0 %2886
  %2888 = vrot.lane.b32.xlu0 %v1940, 64
  %v2889 = vpop.permute.xlu0 %2888
  %2890 = vrot.lane.b32.xlu0 %v1945, 64
  %v2891 = vpop.permute.xlu0 %2890
  %2892 = vrot.lane.b32.xlu0 %v1950, 64
  %v2893 = vpop.permute.xlu0 %2892
  %2894 = vrot.lane.b32.xlu0 %v1955, 64
  %v2895 = vpop.permute.xlu0 %2894
  %2896 = vrot.lane.b32.xlu0 %v1960, 64
  %v2897 = vpop.permute.xlu0 %2896
  %2898 = vrot.lane.b32.xlu0 %v1965, 64
  %v2899 = vpop.permute.xlu0 %2898
  %2900 = vrot.lane.b32.xlu0 %v1970, 64
  %v2901 = vpop.permute.xlu0 %2900
  %2902 = vrot.lane.b32.xlu0 %v1975, 64
  %v2903 = vpop.permute.xlu0 %2902
  %2904 = vrot.lane.b32.xlu0 %v1980, 64
  %v2905 = vpop.permute.xlu0 %2904
  %2906 = vrot.lane.b32.xlu0 %v1985, 64
  %v2907 = vpop.permute.xlu0 %2906
  %2908 = vrot.lane.b32.xlu0 %v1990, 64
  %v2909 = vpop.permute.xlu0 %2908
  %2910 = vrot.lane.b32.xlu0 %v1995, 64
  %v2911 = vpop.permute.xlu0 %2910
  %2912 = vrot.lane.b32.xlu0 %v2000, 64
  %v2913 = vpop.permute.xlu0 %2912
  %2914 = vrot.lane.b32.xlu0 %v2005, 64
  %v2915 = vpop.permute.xlu0 %2914
  %2916 = vrot.lane.b32.xlu0 %v2010, 64
  %v2917 = vpop.permute.xlu0 %2916
  %2918 = vrot.lane.b32.xlu0 %v2015, 64
  %v2919 = vpop.permute.xlu0 %2918
  %2920 = vrot.lane.b32.xlu0 %v2020, 64
  %v2921 = vpop.permute.xlu0 %2920
  %2922 = vrot.lane.b32.xlu0 %v2025, 64
  %v2923 = vpop.permute.xlu0 %2922
  %2924 = vrot.lane.b32.xlu0 %v2030, 64
  %v2925 = vpop.permute.xlu0 %2924
  %2926 = vrot.lane.b32.xlu0 %v2035, 64
  %v2927 = vpop.permute.xlu0 %2926
  %2928 = vrot.lane.b32.xlu0 %v2040, 64
  %v2929 = vpop.permute.xlu0 %2928
  %2930 = vrot.lane.b32.xlu0 %v2045, 64
  %v2931 = vpop.permute.xlu0 %2930
  %2932 = vrot.lane.b32.xlu0 %v2050, 64
  %v2933 = vpop.permute.xlu0 %2932
  %2934 = vrot.lane.b32.xlu0 %v2055, 64
  %v2935 = vpop.permute.xlu0 %2934
  %2936 = vrot.lane.b32.xlu0 %v2060, 64
  %v2937 = vpop.permute.xlu0 %2936
  %3002 = vrot.lane.b32.xlu0 %v1616, 96
  %v3003 = vpop.permute.xlu0 %3002
  %3004 = vrot.lane.b32.xlu0 %v1621, 96
  %v3005 = vpop.permute.xlu0 %3004
  %3006 = vrot.lane.b32.xlu0 %v1626, 96
  %v3007 = vpop.permute.xlu0 %3006
  %3008 = vrot.lane.b32.xlu0 %v1631, 96
  %v3009 = vpop.permute.xlu0 %3008
  %3010 = vrot.lane.b32.xlu0 %v1636, 96
  %v3011 = vpop.permute.xlu0 %3010
  %3012 = vrot.lane.b32.xlu0 %v1641, 96
  %v3013 = vpop.permute.xlu0 %3012
  %3014 = vrot.lane.b32.xlu0 %v1646, 96
  %v3015 = vpop.permute.xlu0 %3014
  %3016 = vrot.lane.b32.xlu0 %v1651, 96
  %v3017 = vpop.permute.xlu0 %3016
  %3018 = vrot.lane.b32.xlu0 %v1656, 96
  %v3019 = vpop.permute.xlu0 %3018
  %3020 = vrot.lane.b32.xlu0 %v1661, 96
  %v3021 = vpop.permute.xlu0 %3020
  %3022 = vrot.lane.b32.xlu0 %v1666, 96
  %v3023 = vpop.permute.xlu0 %3022
  %3024 = vrot.lane.b32.xlu0 %v1671, 96
  %v3025 = vpop.permute.xlu0 %3024
  %3026 = vrot.lane.b32.xlu0 %v1676, 96
  %v3027 = vpop.permute.xlu0 %3026
  %3028 = vrot.lane.b32.xlu0 %v1681, 96
  %v3029 = vpop.permute.xlu0 %3028
  %3030 = vrot.lane.b32.xlu0 %v1686, 96
  %v3031 = vpop.permute.xlu0 %3030
  %3032 = vrot.lane.b32.xlu0 %v1691, 96
  %v3033 = vpop.permute.xlu0 %3032
  %3034 = vrot.lane.b32.xlu0 %v1696, 96
  %v3035 = vpop.permute.xlu0 %3034
  %3036 = vrot.lane.b32.xlu0 %v1701, 96
  %v3037 = vpop.permute.xlu0 %3036
  %3038 = vrot.lane.b32.xlu0 %v1706, 96
  %v3039 = vpop.permute.xlu0 %3038
  %3040 = vrot.lane.b32.xlu0 %v1711, 96
  %v3041 = vpop.permute.xlu0 %3040
  %3042 = vrot.lane.b32.xlu0 %v1716, 96
  %v3043 = vpop.permute.xlu0 %3042
  %3044 = vrot.lane.b32.xlu0 %v1721, 96
  %v3045 = vpop.permute.xlu0 %3044
  %3046 = vrot.lane.b32.xlu0 %v1726, 96
  %v3047 = vpop.permute.xlu0 %3046
  %3048 = vrot.lane.b32.xlu0 %v1731, 96
  %v3049 = vpop.permute.xlu0 %3048
  %3050 = vrot.lane.b32.xlu0 %v1736, 96
  %v3051 = vpop.permute.xlu0 %3050
  %3052 = vrot.lane.b32.xlu0 %v1741, 96
  %v3053 = vpop.permute.xlu0 %3052
  %3054 = vrot.lane.b32.xlu0 %v1746, 96
  %v3055 = vpop.permute.xlu0 %3054
  %3056 = vrot.lane.b32.xlu0 %v1751, 96
  %v3057 = vpop.permute.xlu0 %3056
  %3058 = vrot.lane.b32.xlu0 %v1756, 96
  %v3059 = vpop.permute.xlu0 %3058
  %3060 = vrot.lane.b32.xlu0 %v1761, 96
  %v3061 = vpop.permute.xlu0 %3060
  %3062 = vrot.lane.b32.xlu0 %v1766, 96
  %v3063 = vpop.permute.xlu0 %3062
  %3064 = vrot.lane.b32.xlu0 %v1771, 96
  %v3065 = vpop.permute.xlu0 %3064
  %v3098 = vsel %vm187, %v2682, %v2747
  %v3099 = vsel %vm187, %v2683, %v2749
  %v3100 = vsel %vm187, %v2684, %v2751
  %v3101 = vsel %vm187, %v2685, %v2753
  %v3102 = vsel %vm187, %v2686, %v2755
  %v3103 = vsel %vm187, %v2687, %v2757
  %v3104 = vsel %vm187, %v2688, %v2759
  %v3105 = vsel %vm187, %v2689, %v2761
  %v3106 = vsel %vm187, %v2690, %v2763
  %v3107 = vsel %vm187, %v2691, %v2765
  %v3108 = vsel %vm187, %v2692, %v2767
  %v3109 = vsel %vm187, %v2693, %v2769
  %v3110 = vsel %vm187, %v2694, %v2771
  %v3111 = vsel %vm187, %v2695, %v2773
  %v3112 = vsel %vm187, %v2696, %v2775
  %v3113 = vsel %vm187, %v2697, %v2777
  %v3114 = vsel %vm187, %v2698, %v2779
  %v3115 = vsel %vm187, %v2699, %v2781
  %v3116 = vsel %vm187, %v2700, %v2783
  %v3117 = vsel %vm187, %v2701, %v2785
  %v3118 = vsel %vm187, %v2702, %v2787
  %v3119 = vsel %vm187, %v2703, %v2789
  %v3120 = vsel %vm187, %v2704, %v2791
  %v3121 = vsel %vm187, %v2705, %v2793
  %v3122 = vsel %vm187, %v2706, %v2795
  %v3123 = vsel %vm187, %v2707, %v2797
  %v3124 = vsel %vm187, %v2708, %v2799
  %v3125 = vsel %vm187, %v2709, %v2801
  %v3126 = vsel %vm187, %v2710, %v2803
  %v3127 = vsel %vm187, %v2711, %v2805
  %v3128 = vsel %vm187, %v2712, %v2807
  %v3129 = vsel %vm187, %v2713, %v2809
  %v3130 = vsel %vm1452, %v3098, %v2875
  %v3131 = vsel %vm1452, %v3099, %v2877
  %v3132 = vsel %vm1452, %v3100, %v2879
  %v3133 = vsel %vm1452, %v3101, %v2881
  %v3134 = vsel %vm1452, %v3102, %v2883
  %v3135 = vsel %vm1452, %v3103, %v2885
  %v3136 = vsel %vm1452, %v3104, %v2887
  %v3137 = vsel %vm1452, %v3105, %v2889
  %v3138 = vsel %vm1452, %v3106, %v2891
  %v3139 = vsel %vm1452, %v3107, %v2893
  %v3140 = vsel %vm1452, %v3108, %v2895
  %v3141 = vsel %vm1452, %v3109, %v2897
  %v3142 = vsel %vm1452, %v3110, %v2899
  %v3143 = vsel %vm1452, %v3111, %v2901
  %v3144 = vsel %vm1452, %v3112, %v2903
  %v3145 = vsel %vm1452, %v3113, %v2905
  %v3146 = vsel %vm1452, %v3114, %v2907
  %v3147 = vsel %vm1452, %v3115, %v2909
  %v3148 = vsel %vm1452, %v3116, %v2911
  %v3149 = vsel %vm1452, %v3117, %v2913
  %v3150 = vsel %vm1452, %v3118, %v2915
  %v3151 = vsel %vm1452, %v3119, %v2917
  %v3152 = vsel %vm1452, %v3120, %v2919
  %v3153 = vsel %vm1452, %v3121, %v2921
  %v3154 = vsel %vm1452, %v3122, %v2923
  %v3155 = vsel %vm1452, %v3123, %v2925
  %v3156 = vsel %vm1452, %v3124, %v2927
  %v3157 = vsel %vm1452, %v3125, %v2929
  %v3158 = vsel %vm1452, %v3126, %v2931
  %v3159 = vsel %vm1452, %v3127, %v2933
  %v3160 = vsel %vm1452, %v3128, %v2935
  %v3161 = vsel %vm1452, %v3129, %v2937
  %vm3162 = vcmask 785408
  %v3163 = vsel %vm3162, %v3130, %v3003
  %v3164 = vsel %vm3162, %v3131, %v3005
  %v3165 = vsel %vm3162, %v3132, %v3007
  %v3166 = vsel %vm3162, %v3133, %v3009
  %v3167 = vsel %vm3162, %v3134, %v3011
  %v3168 = vsel %vm3162, %v3135, %v3013
  %v3169 = vsel %vm3162, %v3136, %v3015
  %v3170 = vsel %vm3162, %v3137, %v3017
  %v3171 = vsel %vm3162, %v3138, %v3019
  %v3172 = vsel %vm3162, %v3139, %v3021
  %v3173 = vsel %vm3162, %v3140, %v3023
  %v3174 = vsel %vm3162, %v3141, %v3025
  %v3175 = vsel %vm3162, %v3142, %v3027
  %v3176 = vsel %vm3162, %v3143, %v3029
  %v3177 = vsel %vm3162, %v3144, %v3031
  %v3178 = vsel %vm3162, %v3145, %v3033
  %v3179 = vsel %vm3162, %v3146, %v3035
  %v3180 = vsel %vm3162, %v3147, %v3037
  %v3181 = vsel %vm3162, %v3148, %v3039
  %v3182 = vsel %vm3162, %v3149, %v3041
  %v3183 = vsel %vm3162, %v3150, %v3043
  %v3184 = vsel %vm3162, %v3151, %v3045
  %v3185 = vsel %vm3162, %v3152, %v3047
  %v3186 = vsel %vm3162, %v3153, %v3049
  %v3187 = vsel %vm3162, %v3154, %v3051
  %v3188 = vsel %vm3162, %v3155, %v3053
  %v3189 = vsel %vm3162, %v3156, %v3055
  %v3190 = vsel %vm3162, %v3157, %v3057
  %v3191 = vsel %vm3162, %v3158, %v3059
  %v3192 = vsel %vm3162, %v3159, %v3061
  %v3193 = vsel %vm3162, %v3160, %v3063
  %v3194 = vsel %vm3162, %v3161, %v3065
  %v3195 = vsel %vm187, %v2460, 0.0
  %v3196 = vsel %vm187, %v2465, 0.0
  %v3197 = vsel %vm187, %v2470, 0.0
  %v3198 = vsel %vm187, %v2475, 0.0
  %v3199 = vsel %vm187, %v2480, 0.0
  %v3200 = vsel %vm187, %v2485, 0.0
  %v3201 = vsel %vm187, %v2490, 0.0
  %v3202 = vsel %vm187, %v2495, 0.0
  %v3203 = vsel %vm187, %v2500, 0.0
  %v3204 = vsel %vm187, %v2505, 0.0
  %v3205 = vsel %vm187, %v2510, 0.0
  %v3206 = vsel %vm187, %v2515, 0.0
  %v3207 = vsel %vm187, %v2520, 0.0
  %v3208 = vsel %vm187, %v2525, 0.0
  %v3209 = vsel %vm187, %v2530, 0.0
  %v3210 = vsel %vm187, %v2535, 0.0
  %v3211 = vsel %vm187, %v2540, 0.0
  %v3212 = vsel %vm187, %v2545, 0.0
  %v3213 = vsel %vm187, %v2550, 0.0
  %v3214 = vsel %vm187, %v2555, 0.0
  %v3215 = vsel %vm187, %v2560, 0.0
  %v3216 = vsel %vm187, %v2565, 0.0
  %v3217 = vsel %vm187, %v2570, 0.0
  %v3218 = vsel %vm187, %v2575, 0.0
  %v3219 = vsel %vm187, %v2580, 0.0
  %v3220 = vsel %vm187, %v2585, 0.0
  %v3221 = vsel %vm187, %v2590, 0.0
  %v3222 = vsel %vm187, %v2595, 0.0
  %v3223 = vsel %vm187, %v2600, 0.0
  %v3224 = vsel %vm187, %v2605, 0.0
  %v3225 = vsel %vm187, %v2610, 0.0
  %v3226 = vsel %vm187, %v2615, 0.0
  %3227 = vst [vmem:[%s6] sm:$0xff] %v3163
  %3228 = vst [vmem:[%s6 + $0x8] sm:$0xff] %v3195
  %3229 = vst [vmem:[%s6 + $0x10] sm:$0xff] %v3164
  %3230 = vst [vmem:[%s6 + $0x18] sm:$0xff] %v3196
  %3231 = vst [vmem:[%s6 + $0x20] sm:$0xff] %v3165
  %3232 = vst [vmem:[%s6 + $0x28] sm:$0xff] %v3197
  %3233 = vst [vmem:[%s6 + $0x30] sm:$0xff] %v3166
  %3234 = vst [vmem:[%s6 + $0x38] sm:$0xff] %v3198
  %3235 = vst [vmem:[%s6 + $0x40] sm:$0xff] %v3167
  %3236 = vst [vmem:[%s6 + $0x48] sm:$0xff] %v3199
  %3237 = vst [vmem:[%s6 + $0x50] sm:$0xff] %v3168
  %3238 = vst [vmem:[%s6 + $0x58] sm:$0xff] %v3200
  %3239 = vst [vmem:[%s6 + $0x60] sm:$0xff] %v3169
  %3240 = vst [vmem:[%s6 + $0x68] sm:$0xff] %v3201
  %3241 = vst [vmem:[%s6 + $0x70] sm:$0xff] %v3170
  %3242 = vst [vmem:[%s6 + $0x78] sm:$0xff] %v3202
  %3243 = vst [vmem:[%s6 + $0x80] sm:$0xff] %v3171
  %3244 = vst [vmem:[%s6 + $0x88] sm:$0xff] %v3203
  %3245 = vst [vmem:[%s6 + $0x90] sm:$0xff] %v3172
  %3246 = vst [vmem:[%s6 + $0x98] sm:$0xff] %v3204
  %3247 = vst [vmem:[%s6 + $0xa0] sm:$0xff] %v3173
  %3248 = vst [vmem:[%s6 + $0xa8] sm:$0xff] %v3205
  %3249 = vst [vmem:[%s6 + $0xb0] sm:$0xff] %v3174
  %3250 = vst [vmem:[%s6 + $0xb8] sm:$0xff] %v3206
  %3251 = vst [vmem:[%s6 + $0xc0] sm:$0xff] %v3175
  %3252 = vst [vmem:[%s6 + $0xc8] sm:$0xff] %v3207
  %3253 = vst [vmem:[%s6 + $0xd0] sm:$0xff] %v3176
  %3254 = vst [vmem:[%s6 + $0xd8] sm:$0xff] %v3208
  %3255 = vst [vmem:[%s6 + $0xe0] sm:$0xff] %v3177
  %3256 = vst [vmem:[%s6 + $0xe8] sm:$0xff] %v3209
  %3257 = vst [vmem:[%s6 + $0xf0] sm:$0xff] %v3178
  %3258 = vst [vmem:[%s6 + $0xf8] sm:$0xff] %v3210
  %3259 = vst [vmem:[%s6 + $0x100] sm:$0xff] %v3179
  %3260 = vst [vmem:[%s6 + $0x108] sm:$0xff] %v3211
  %3261 = vst [vmem:[%s6 + $0x110] sm:$0xff] %v3180
  %3262 = vst [vmem:[%s6 + $0x118] sm:$0xff] %v3212
  %3263 = vst [vmem:[%s6 + $0x120] sm:$0xff] %v3181
  %3264 = vst [vmem:[%s6 + $0x128] sm:$0xff] %v3213
  %3265 = vst [vmem:[%s6 + $0x130] sm:$0xff] %v3182
  %3266 = vst [vmem:[%s6 + $0x138] sm:$0xff] %v3214
  %3267 = vst [vmem:[%s6 + $0x140] sm:$0xff] %v3183
  %3268 = vst [vmem:[%s6 + $0x148] sm:$0xff] %v3215
  %3269 = vst [vmem:[%s6 + $0x150] sm:$0xff] %v3184
  %3270 = vst [vmem:[%s6 + $0x158] sm:$0xff] %v3216
  %3271 = vst [vmem:[%s6 + $0x160] sm:$0xff] %v3185
  %3272 = vst [vmem:[%s6 + $0x168] sm:$0xff] %v3217
  %3273 = vst [vmem:[%s6 + $0x170] sm:$0xff] %v3186
  %3274 = vst [vmem:[%s6 + $0x178] sm:$0xff] %v3218
  %3275 = vst [vmem:[%s6 + $0x180] sm:$0xff] %v3187
  %3276 = vst [vmem:[%s6 + $0x188] sm:$0xff] %v3219
  %3277 = vst [vmem:[%s6 + $0x190] sm:$0xff] %v3188
  %3278 = vst [vmem:[%s6 + $0x198] sm:$0xff] %v3220
  %3279 = vst [vmem:[%s6 + $0x1a0] sm:$0xff] %v3189
  %3280 = vst [vmem:[%s6 + $0x1a8] sm:$0xff] %v3221
  %3281 = vst [vmem:[%s6 + $0x1b0] sm:$0xff] %v3190
  %3282 = vst [vmem:[%s6 + $0x1b8] sm:$0xff] %v3222
  %3283 = vst [vmem:[%s6 + $0x1c0] sm:$0xff] %v3191
  %3284 = vst [vmem:[%s6 + $0x1c8] sm:$0xff] %v3223
  %3285 = vst [vmem:[%s6 + $0x1d0] sm:$0xff] %v3192
  %3286 = vst [vmem:[%s6 + $0x1d8] sm:$0xff] %v3224
  %3287 = vst [vmem:[%s6 + $0x1e0] sm:$0xff] %v3193
  %3288 = vst [vmem:[%s6 + $0x1e8] sm:$0xff] %v3225
  %3289 = vst [vmem:[%s6 + $0x1f0] sm:$0xff] %v3194
  %3290 = vst [vmem:[%s6 + $0x1f8] sm:$0xff] %v3226
  // Predicated region
  $region26: #{model_forward.1} parent=0 // pred_check
    _
  $region27: #{model_forward.1} parent=0 // pred_check_branch
    %3292 = sbr.rel (0) target = $region29
  $region28: #{model_forward.1} parent=0 // pred_region
    _
  $region29: #{model_forward.1} parent=0 // pred_fallthru
    _
  // Predicated region
  $region30: #{model_forward.1} parent=0 // pred_check
    _
  $region31: #{model_forward.1} parent=0 // pred_check_branch
    %3294 = sbr.rel (0) target = $region33
  $region32: #{model_forward.1} parent=0 // pred_region
    _
  $region33: #{model_forward.1} parent=0 // pred_fallthru
    _

</llo_original>
